<compile_context>
chip_gen: v7x
topology: tpu7x:2x2x1
jax: 0.10.0
libtpu: 0.0.40
codegen_flags: <defaults>
</compile_context>

<pallas_src>
import functools

import jax
import jax.numpy as jnp
from jax.experimental import pallas as pl
from jax.experimental.pallas import tpu as pltpu


# ----------------------------- in-kernel math ------------------------------

def _erf(x):
    # Abramowitz & Stegun 7.1.26, |err| <= 1.5e-7: matches torch's exact
    # (erf-based) GELU to float32 precision.
    p = 0.3275911
    a1, a2, a3, a4, a5 = (0.254829592, -0.284496736, 1.421413741,
                          -1.453152027, 1.061405429)
    ax = jnp.abs(x)
    t = 1.0 / (1.0 + p * ax)
    poly = ((((a5 * t + a4) * t + a3) * t + a2) * t + a1) * t
    y = 1.0 - poly * jnp.exp(-ax * ax)
    return jnp.where(x >= 0, y, -y)


def _gelu(x):
    return 0.5 * x * (1.0 + _erf(x * 0.7071067811865476))


def _layernorm(x, g, b, eps=1e-5):
    mu = jnp.mean(x, axis=-1, keepdims=True)
    var = jnp.mean((x - mu) ** 2, axis=-1, keepdims=True)
    return (x - mu) * jax.lax.rsqrt(var + eps) * g + b


def _image_transpose_parts(u, n_img, d):
    """Row-stacked (n_img*d, d) images -> list of the n_img transposed (d,d) images."""
    return [u[i * d:(i + 1) * d, :].T for i in range(n_img)]


# ----------------------------- MFBlock kernel ------------------------------

def _mfblock_kernel(xr_ref, xi_ref, f_ref, pd_ref, bf1_ref, w1_ref, w2_ref,
                    or_ref, oi_ref, *, tn, d):
    tm = tn * d
    dot = lambda a, b: jnp.dot(a, b, preferred_element_type=jnp.float32)

    fr = f_ref[0]                       # (D, D) f32 DFT real part (symmetric)
    fi = f_ref[1]                       # (D, D) f32 DFT imag part (symmetric)

    # Inputs arrive per-image TRANSPOSED (wrapper layout plumbing).
    # Real/imag fused along sublanes: rows [0, tm) real, rows [tm, 2*tm) imag.
    x = jnp.concatenate([xr_ref[...], xi_ref[...]], axis=0)      # (2*tm, D)

    # ---- column FFT (dim=-2): v = F @ x = (x^T @ F)^T.  x^T comes pre-made,
    # so this is 2 fat dots + ONE per-image XLU transpose stage. -------------
    p = dot(x, fr)
    q = dot(x, fi)
    pr = p[:tm] - q[tm:]                # Re(x^T @ F) rows-stacked
    pj = q[:tm] + p[tm:]                # Im(x^T @ F) rows-stacked
    v = jnp.concatenate(_image_transpose_parts(pr, tn, d) +
                        _image_transpose_parts(pj, tn, d), axis=0)   # (2*tm, D)

    # ---- row FFT (dim=-1): z = v @ F (complex) as 2 fat dots. ---------------
    pw = dot(v, fr)
    qw = dot(v, fi)
    zr = pw[:tm] - qw[tm:]              # Vr@Fr - Vi@Fi
    zi = qw[:tm] + pw[tm:]              # Vr@Fi + Vi@Fr
    z = jnp.concatenate([zr, zi], axis=0)                        # (2*tm, D)

    # ---- ComplexFn(LayerNorm) + ComplexFn(PreNorm(FeedForward)) -------------
    # One pass over the fused (2*tm, D) slab == applying the same real-valued
    # function to the real and imaginary parts independently.
    pd = pd_ref[...]                    # (5, D): g1, b1, g2, b2, linear2-bias
    a = _layernorm(z, pd[0:1], pd[1:2])
    a = _layernorm(a, pd[2:3], pd[3:4])
    # FF dots: bf16 operands on the MXU, f32 accumulation; LN/GELU stay f32.
    h = dot(a.astype(jnp.bfloat16), w1_ref[...]) + bf1_ref[...]
    h = _gelu(h)
    y = dot(h.astype(jnp.bfloat16), w2_ref[...]) + pd[4:5]

    or_ref[...] = y[:tm]
    oi_ref[...] = y[tm:]


def _choose_tn(n, d, max_rows=512):
    """Images per grid step: as many as the row budget allows while keeping
    tn | n and >= 2 grid steps (so v7x's two TensorCores both get work)."""
    best = 1
    for cand in range(1, n + 1):
        if n % cand == 0 and cand * d <= max_rows:
            best = cand
    if best == n and n > 1:
        for cand in range(n // 2, 0, -1):
            if n % cand == 0:
                best = cand
                break
    return best


def mfblock(xr, xi, params, *, tn=None):
    """MFBlock forward.  xr/xi: (B, C, D, D) float32 real/imag parts of the input.
    Returns the (real, imag) parts of the complex output, each (B, C, D, D)."""
    B, C, D, D2 = xr.shape
    assert D == D2 and xi.shape == xr.shape
    n = B * C
    if tn is None:
        tn = _choose_tn(n, D)
    assert n % tn == 0
    tm = tn * D
    mh = params["w1"].shape[1]

    # Layout plumbing: hand the kernel per-image-transposed inputs so the
    # column FFT becomes a plain right-multiply; only one in-kernel transpose
    # stage remains and the output comes out in natural layout.
    xrt = jnp.swapaxes(xr, -1, -2).reshape(n * D, D)
    xit = jnp.swapaxes(xi, -1, -2).reshape(n * D, D)

    row_spec = pl.BlockSpec((tm, D), lambda i: (i, 0))

    def full(shape):
        nd = len(shape)
        return pl.BlockSpec(shape, lambda i, nd=nd: (0,) * nd)

    kernel = functools.partial(_mfblock_kernel, tn=tn, d=D)
    out_r, out_i = pl.pallas_call(
        kernel,
        grid=(n // tn,),
        in_specs=[
            row_spec, row_spec,
            full((2, D, D)),            # packed DFT matrices [Fr, Fi]  (f32)
            full((5, D)),               # packed g1, b1, g2, b2, linear2-bias (f32)
            full((1, mh)),              # linear1 bias (f32)
            full((D, mh)),              # linear1 weight (bf16)
            full((mh, D)),              # linear2 weight (bf16)
        ],
        out_specs=[row_spec, row_spec],
        out_shape=[jax.ShapeDtypeStruct((n * D, D), jnp.float32)] * 2,
        compiler_params=pltpu.CompilerParams(
            dimension_semantics=("parallel",)),
    )(xrt, xit, params["f"], params["pd"], params["bf1"],
      params["w1"], params["w2"])
    return out_r.reshape(B, C, D, D), out_i.reshape(B, C, D, D)


# ----------------------------- params / reference --------------------------

def init_mfblock_params(key, *, dim, mlp_dim):
    """Parameters of one MFBlock(dim, mlp_dim): 2 LayerNorms + FeedForward, plus
    the DFT matrix used to realize fft2 as matmuls."""
    d, mh = dim, mlp_dim
    idx = jnp.arange(d, dtype=jnp.float32)
    ang = -2.0 * jnp.pi * jnp.outer(idx, idx) / d
    f = jnp.stack([jnp.cos(ang), jnp.sin(ang)]).astype(jnp.float32)  # (2, d, d)

    k1, k2, k3, k4 = jax.random.split(key, 4)
    w1 = 0.1 * jax.random.normal(k1, (d, mh), jnp.float32)
    b1 = 0.1 * jax.random.normal(k2, (mh,), jnp.float32)
    w2 = 0.1 * jax.random.normal(k3, (mh, d), jnp.float32)
    b2 = 0.1 * jax.random.normal(k4, (d,), jnp.float32)

    pd = jnp.stack([jnp.ones((d,), jnp.float32),     # LayerNorm1 weight
                    jnp.zeros((d,), jnp.float32),    # LayerNorm1 bias
                    jnp.ones((d,), jnp.float32),     # LayerNorm2 weight
                    jnp.zeros((d,), jnp.float32),    # LayerNorm2 bias
                    b2])                             # Linear2 bias
    return {"f": f, "pd": pd,
            "bf1": b1.reshape(1, mh),
            "w1": w1.astype(jnp.bfloat16),           # MXU operands stored in bf16
            "w2": w2.astype(jnp.bfloat16)}


def mfblock_ref(xr, xi, params):
    """Pure-JAX reference (same bf16-rounded FF weights, all-f32 activations)."""
    g1, b1, g2, b2, fb2 = [params["pd"][i] for i in range(5)]
    w1 = params["w1"].astype(jnp.float32)
    w2 = params["w2"].astype(jnp.float32)
    bf1 = params["bf1"][0]

    z = jnp.fft.fft(jnp.fft.fft(xr + 1j * xi, axis=-1), axis=-2)

    def ln(v, g, b, eps=1e-5):
        mu = v.mean(-1, keepdims=True)
        var = ((v - mu) ** 2).mean(-1, keepdims=True)
        return (v - mu) / jnp.sqrt(var + eps) * g + b

    def branch(v):
        v = ln(v, g1, b1)
        v = ln(v, g2, b2)
        h = v @ w1 + bf1
        h = 0.5 * h * (1.0 + jax.lax.erf(h * 0.7071067811865476))
        return h @ w2 + fb2

    return (branch(z.real.astype(jnp.float32)),
            branch(z.imag.astype(jnp.float32)))


# ----------------------------- demo -----------------------------------------

if __name__ == "__main__":
    key = jax.random.PRNGKey(0)
    kx, ki, kp = jax.random.split(key, 3)

    B, C, D, MLP = 2, 4, 16, 64            # MFBlock(dim=16, mlp_dim=64)
    xr = jax.random.normal(kx, (B, C, D, D), dtype=jnp.float32)
    xi = jax.random.normal(ki, (B, C, D, D), dtype=jnp.float32)
    params = init_mfblock_params(kp, dim=D, mlp_dim=MLP)

    out_r, out_i = mfblock(xr, xi, params)
    jax.block_until_ready((out_r, out_i))
    assert out_r.shape == (B, C, D, D) and out_i.shape == (B, C, D, D)

    # correctness check vs pure-JAX reference (tolerance covers bf16 FF casts)
    ref_r, ref_i = mfblock_ref(xr, xi, params)
    err = max(float(jnp.max(jnp.abs(out_r - ref_r))),
              float(jnp.max(jnp.abs(out_i - ref_i))))
    assert err < 3e-2, f"mismatch vs reference: max abs err = {err}"

    print("KERNEL_OK")
</pallas_src>

<mosaic_0001>
module attributes {stable_mosaic.version = 11 : i64} {
  func.func @_mfblock_kernel(%arg0: i32, %arg1: memref<64x16xf32, #tpu.memory_space<vmem>>, %arg2: memref<64x16xf32, #tpu.memory_space<vmem>>, %arg3: memref<2x16x16xf32, #tpu.memory_space<vmem>>, %arg4: memref<5x16xf32, #tpu.memory_space<vmem>>, %arg5: memref<1x64xf32, #tpu.memory_space<vmem>>, %arg6: memref<16x64xbf16, #tpu.memory_space<vmem>>, %arg7: memref<64x16xbf16, #tpu.memory_space<vmem>>, %arg8: memref<64x16xf32, #tpu.memory_space<vmem>>, %arg9: memref<64x16xf32, #tpu.memory_space<vmem>>) attributes {dimension_semantics = [#tpu.dimension_semantics<parallel>], iteration_bounds = array<i64: 2>, scalar_prefetch = 0 : i64, scratch_operands = 0 : i64, tpu.core_type = #tpu.core_type<tc>, window_params = [{transform_indices = @transform_0, window_bounds = array<i64: 64, 16>}, {transform_indices = @transform_1, window_bounds = array<i64: 64, 16>}, {pipeline_mode = #tpu.pipeline_mode<synchronous>, transform_indices = @transform_2, window_bounds = array<i64: 2, 16, 16>}, {pipeline_mode = #tpu.pipeline_mode<synchronous>, transform_indices = @transform_3, window_bounds = array<i64: 5, 16>}, {pipeline_mode = #tpu.pipeline_mode<synchronous>, transform_indices = @transform_4, window_bounds = array<i64: 1, 64>}, {pipeline_mode = #tpu.pipeline_mode<synchronous>, transform_indices = @transform_5, window_bounds = array<i64: 16, 64>}, {pipeline_mode = #tpu.pipeline_mode<synchronous>, transform_indices = @transform_6, window_bounds = array<i64: 64, 16>}, {transform_indices = @transform_7, window_bounds = array<i64: 64, 16>}, {transform_indices = @transform_8, window_bounds = array<i64: 64, 16>}]} {
    %c0 = arith.constant 0 : index
    %c0_0 = arith.constant 0 : index
    %c0_1 = arith.constant 0 : index
    %0 = vector.load %arg3[%c0, %c0_0, %c0_1] : memref<2x16x16xf32, #tpu.memory_space<vmem>>, vector<1x16x16xf32>
    %1 = vector.shape_cast %0 : vector<1x16x16xf32> to vector<16x16xf32>
    %c1 = arith.constant 1 : index
    %c0_2 = arith.constant 0 : index
    %c0_3 = arith.constant 0 : index
    %2 = vector.load %arg3[%c1, %c0_2, %c0_3] : memref<2x16x16xf32, #tpu.memory_space<vmem>>, vector<1x16x16xf32>
    %3 = vector.shape_cast %2 : vector<1x16x16xf32> to vector<16x16xf32>
    %c0_4 = arith.constant 0 : index
    %c0_5 = arith.constant 0 : index
    %4 = vector.load %arg1[%c0_4, %c0_5] : memref<64x16xf32, #tpu.memory_space<vmem>>, vector<64x16xf32>
    %c0_6 = arith.constant 0 : index
    %c0_7 = arith.constant 0 : index
    %5 = vector.load %arg2[%c0_6, %c0_7] : memref<64x16xf32, #tpu.memory_space<vmem>>, vector<64x16xf32>
    %6 = tpu.concatenate %4, %5 in 0 : vector<64x16xf32>, vector<64x16xf32> -> vector<128x16xf32>
    %cst = arith.constant dense<0.000000e+00> : vector<128x16xf32>
    %7 = tpu.matmul %6, %1, %cst {dimension_numbers = #tpu.dot_dimension_numbers<[1], [0], [0], [1], [0, 0, 1, 1], [], []>} : vector<128x16xf32>, vector<16x16xf32>, vector<128x16xf32> -> vector<128x16xf32>
    %cst_8 = arith.constant dense<0.000000e+00> : vector<128x16xf32>
    %8 = tpu.matmul %6, %3, %cst_8 {dimension_numbers = #tpu.dot_dimension_numbers<[1], [0], [0], [1], [0, 0, 1, 1], [], []>} : vector<128x16xf32>, vector<16x16xf32>, vector<128x16xf32> -> vector<128x16xf32>
    %9 = vector.extract_strided_slice %7 {offsets = [0, 0], sizes = [64, 16], strides = [1, 1]} : vector<128x16xf32> to vector<64x16xf32>
    %10 = vector.extract_strided_slice %8 {offsets = [64, 0], sizes = [64, 16], strides = [1, 1]} : vector<128x16xf32> to vector<64x16xf32>
    %11 = arith.subf %9, %10 : vector<64x16xf32>
    %12 = vector.extract_strided_slice %8 {offsets = [0, 0], sizes = [64, 16], strides = [1, 1]} : vector<128x16xf32> to vector<64x16xf32>
    %13 = vector.extract_strided_slice %7 {offsets = [64, 0], sizes = [64, 16], strides = [1, 1]} : vector<128x16xf32> to vector<64x16xf32>
    %14 = arith.addf %12, %13 : vector<64x16xf32>
    %15 = vector.extract_strided_slice %11 {offsets = [0, 0], sizes = [16, 16], strides = [1, 1]} : vector<64x16xf32> to vector<16x16xf32>
    %16 = tpu.transpose %15, [1, 0] : vector<16x16xf32> -> vector<16x16xf32>
    %17 = vector.extract_strided_slice %11 {offsets = [16, 0], sizes = [16, 16], strides = [1, 1]} : vector<64x16xf32> to vector<16x16xf32>
    %18 = tpu.transpose %17, [1, 0] : vector<16x16xf32> -> vector<16x16xf32>
    %19 = vector.extract_strided_slice %11 {offsets = [32, 0], sizes = [16, 16], strides = [1, 1]} : vector<64x16xf32> to vector<16x16xf32>
    %20 = tpu.transpose %19, [1, 0] : vector<16x16xf32> -> vector<16x16xf32>
    %21 = vector.extract_strided_slice %11 {offsets = [48, 0], sizes = [16, 16], strides = [1, 1]} : vector<64x16xf32> to vector<16x16xf32>
    %22 = tpu.transpose %21, [1, 0] : vector<16x16xf32> -> vector<16x16xf32>
    %23 = vector.extract_strided_slice %14 {offsets = [0, 0], sizes = [16, 16], strides = [1, 1]} : vector<64x16xf32> to vector<16x16xf32>
    %24 = tpu.transpose %23, [1, 0] : vector<16x16xf32> -> vector<16x16xf32>
    %25 = vector.extract_strided_slice %14 {offsets = [16, 0], sizes = [16, 16], strides = [1, 1]} : vector<64x16xf32> to vector<16x16xf32>
    %26 = tpu.transpose %25, [1, 0] : vector<16x16xf32> -> vector<16x16xf32>
    %27 = vector.extract_strided_slice %14 {offsets = [32, 0], sizes = [16, 16], strides = [1, 1]} : vector<64x16xf32> to vector<16x16xf32>
    %28 = tpu.transpose %27, [1, 0] : vector<16x16xf32> -> vector<16x16xf32>
    %29 = vector.extract_strided_slice %14 {offsets = [48, 0], sizes = [16, 16], strides = [1, 1]} : vector<64x16xf32> to vector<16x16xf32>
    %30 = tpu.transpose %29, [1, 0] : vector<16x16xf32> -> vector<16x16xf32>
    %31 = tpu.concatenate %16, %18, %20, %22, %24, %26, %28, %30 in 0 : vector<16x16xf32>, vector<16x16xf32>, vector<16x16xf32>, vector<16x16xf32>, vector<16x16xf32>, vector<16x16xf32>, vector<16x16xf32>, vector<16x16xf32> -> vector<128x16xf32>
    %cst_9 = arith.constant dense<0.000000e+00> : vector<128x16xf32>
    %32 = tpu.matmul %31, %1, %cst_9 {dimension_numbers = #tpu.dot_dimension_numbers<[1], [0], [0], [1], [0, 0, 1, 1], [], []>} : vector<128x16xf32>, vector<16x16xf32>, vector<128x16xf32> -> vector<128x16xf32>
    %cst_10 = arith.constant dense<0.000000e+00> : vector<128x16xf32>
    %33 = tpu.matmul %31, %3, %cst_10 {dimension_numbers = #tpu.dot_dimension_numbers<[1], [0], [0], [1], [0, 0, 1, 1], [], []>} : vector<128x16xf32>, vector<16x16xf32>, vector<128x16xf32> -> vector<128x16xf32>
    %34 = vector.extract_strided_slice %32 {offsets = [0, 0], sizes = [64, 16], strides = [1, 1]} : vector<128x16xf32> to vector<64x16xf32>
    %35 = vector.extract_strided_slice %33 {offsets = [64, 0], sizes = [64, 16], strides = [1, 1]} : vector<128x16xf32> to vector<64x16xf32>
    %36 = arith.subf %34, %35 : vector<64x16xf32>
    %37 = vector.extract_strided_slice %33 {offsets = [0, 0], sizes = [64, 16], strides = [1, 1]} : vector<128x16xf32> to vector<64x16xf32>
    %38 = vector.extract_strided_slice %32 {offsets = [64, 0], sizes = [64, 16], strides = [1, 1]} : vector<128x16xf32> to vector<64x16xf32>
    %39 = arith.addf %37, %38 : vector<64x16xf32>
    %40 = tpu.concatenate %36, %39 in 0 : vector<64x16xf32>, vector<64x16xf32> -> vector<128x16xf32>
    %c0_11 = arith.constant 0 : index
    %c0_12 = arith.constant 0 : index
    %41 = vector.load %arg4[%c0_11, %c0_12] : memref<5x16xf32, #tpu.memory_space<vmem>>, vector<5x16xf32>
    %42 = vector.extract_strided_slice %41 {offsets = [0, 0], sizes = [1, 16], strides = [1, 1]} : vector<5x16xf32> to vector<1x16xf32>
    %43 = vector.extract_strided_slice %41 {offsets = [1, 0], sizes = [1, 16], strides = [1, 1]} : vector<5x16xf32> to vector<1x16xf32>
    %cst_13 = arith.constant dense<0.000000e+00> : vector<128xf32>
    %44 = vector.multi_reduction <add>, %40, %cst_13 [1] : vector<128x16xf32> to vector<128xf32>
    %45 = vector.shape_cast %44 : vector<128xf32> to vector<128x1xf32>
    %cst_14 = arith.constant 1.600000e+01 : f32
    %46 = vector.broadcast %cst_14 : f32 to vector<128x1xf32>
    %47 = arith.divf %45, %46 : vector<128x1xf32>
    %48 = vector.broadcast %47 : vector<128x1xf32> to vector<128x16xf32>
    %49 = arith.subf %40, %48 : vector<128x16xf32>
    %50 = arith.mulf %49, %49 : vector<128x16xf32>
    %cst_15 = arith.constant dense<0.000000e+00> : vector<128xf32>
    %51 = vector.multi_reduction <add>, %50, %cst_15 [1] : vector<128x16xf32> to vector<128xf32>
    %52 = vector.shape_cast %51 : vector<128xf32> to vector<128x1xf32>
    %cst_16 = arith.constant 1.600000e+01 : f32
    %53 = vector.broadcast %cst_16 : f32 to vector<128x1xf32>
    %54 = arith.divf %52, %53 : vector<128x1xf32>
    %55 = vector.broadcast %47 : vector<128x1xf32> to vector<128x16xf32>
    %56 = arith.subf %40, %55 : vector<128x16xf32>
    %cst_17 = arith.constant 9.99999974E-6 : f32
    %57 = vector.broadcast %cst_17 : f32 to vector<128x1xf32>
    %58 = arith.addf %54, %57 : vector<128x1xf32>
    %59 = math.rsqrt %58 : vector<128x1xf32>
    %60 = vector.broadcast %59 : vector<128x1xf32> to vector<128x16xf32>
    %61 = arith.mulf %56, %60 : vector<128x16xf32>
    %62 = vector.broadcast %42 : vector<1x16xf32> to vector<128x16xf32>
    %63 = arith.mulf %61, %62 : vector<128x16xf32>
    %64 = vector.broadcast %43 : vector<1x16xf32> to vector<128x16xf32>
    %65 = arith.addf %63, %64 : vector<128x16xf32>
    %66 = vector.extract_strided_slice %41 {offsets = [2, 0], sizes = [1, 16], strides = [1, 1]} : vector<5x16xf32> to vector<1x16xf32>
    %67 = vector.extract_strided_slice %41 {offsets = [3, 0], sizes = [1, 16], strides = [1, 1]} : vector<5x16xf32> to vector<1x16xf32>
    %cst_18 = arith.constant dense<0.000000e+00> : vector<128xf32>
    %68 = vector.multi_reduction <add>, %65, %cst_18 [1] : vector<128x16xf32> to vector<128xf32>
    %69 = vector.shape_cast %68 : vector<128xf32> to vector<128x1xf32>
    %cst_19 = arith.constant 1.600000e+01 : f32
    %70 = vector.broadcast %cst_19 : f32 to vector<128x1xf32>
    %71 = arith.divf %69, %70 : vector<128x1xf32>
    %72 = vector.broadcast %71 : vector<128x1xf32> to vector<128x16xf32>
    %73 = arith.subf %65, %72 : vector<128x16xf32>
    %74 = arith.mulf %73, %73 : vector<128x16xf32>
    %cst_20 = arith.constant dense<0.000000e+00> : vector<128xf32>
    %75 = vector.multi_reduction <add>, %74, %cst_20 [1] : vector<128x16xf32> to vector<128xf32>
    %76 = vector.shape_cast %75 : vector<128xf32> to vector<128x1xf32>
    %cst_21 = arith.constant 1.600000e+01 : f32
    %77 = vector.broadcast %cst_21 : f32 to vector<128x1xf32>
    %78 = arith.divf %76, %77 : vector<128x1xf32>
    %79 = vector.broadcast %71 : vector<128x1xf32> to vector<128x16xf32>
    %80 = arith.subf %65, %79 : vector<128x16xf32>
    %cst_22 = arith.constant 9.99999974E-6 : f32
    %81 = vector.broadcast %cst_22 : f32 to vector<128x1xf32>
    %82 = arith.addf %78, %81 : vector<128x1xf32>
    %83 = math.rsqrt %82 : vector<128x1xf32>
    %84 = vector.broadcast %83 : vector<128x1xf32> to vector<128x16xf32>
    %85 = arith.mulf %80, %84 : vector<128x16xf32>
    %86 = vector.broadcast %66 : vector<1x16xf32> to vector<128x16xf32>
    %87 = arith.mulf %85, %86 : vector<128x16xf32>
    %88 = vector.broadcast %67 : vector<1x16xf32> to vector<128x16xf32>
    %89 = arith.addf %87, %88 : vector<128x16xf32>
    %90 = arith.truncf %89 : vector<128x16xf32> to vector<128x16xbf16>
    %c0_23 = arith.constant 0 : index
    %c0_24 = arith.constant 0 : index
    %91 = vector.load %arg6[%c0_23, %c0_24] : memref<16x64xbf16, #tpu.memory_space<vmem>>, vector<16x64xbf16>
    %cst_25 = arith.constant dense<0.000000e+00> : vector<128x64xf32>
    %92 = tpu.matmul %90, %91, %cst_25 {dimension_numbers = #tpu.dot_dimension_numbers<[1], [0], [0], [1], [0, 0, 1, 1], [], []>} : vector<128x16xbf16>, vector<16x64xbf16>, vector<128x64xf32> -> vector<128x64xf32>
    %c0_26 = arith.constant 0 : index
    %c0_27 = arith.constant 0 : index
    %93 = vector.load %arg5[%c0_26, %c0_27] : memref<1x64xf32, #tpu.memory_space<vmem>>, vector<1x64xf32>
    %94 = vector.broadcast %93 : vector<1x64xf32> to vector<128x64xf32>
    %95 = arith.addf %92, %94 : vector<128x64xf32>
    %cst_28 = arith.constant 5.000000e-01 : f32
    %96 = vector.broadcast %cst_28 : f32 to vector<128x64xf32>
    %97 = arith.mulf %96, %95 : vector<128x64xf32>
    %cst_29 = arith.constant 0.707106769 : f32
    %98 = vector.broadcast %cst_29 : f32 to vector<128x64xf32>
    %99 = arith.mulf %95, %98 : vector<128x64xf32>
    %100 = math.absf %99 : vector<128x64xf32>
    %cst_30 = arith.constant 0.327591091 : f32
    %101 = vector.broadcast %cst_30 : f32 to vector<128x64xf32>
    %102 = arith.mulf %101, %100 : vector<128x64xf32>
    %cst_31 = arith.constant 1.000000e+00 : f32
    %103 = vector.broadcast %cst_31 : f32 to vector<128x64xf32>
    %104 = arith.addf %103, %102 : vector<128x64xf32>
    %cst_32 = arith.constant 1.000000e+00 : f32
    %105 = vector.broadcast %cst_32 : f32 to vector<128x64xf32>
    %106 = arith.divf %105, %104 : vector<128x64xf32>
    %cst_33 = arith.constant 1.06140542 : f32
    %107 = vector.broadcast %cst_33 : f32 to vector<128x64xf32>
    %108 = arith.mulf %107, %106 : vector<128x64xf32>
    %cst_34 = arith.constant -1.45315206 : f32
    %109 = vector.broadcast %cst_34 : f32 to vector<128x64xf32>
    %110 = arith.addf %108, %109 : vector<128x64xf32>
    %111 = arith.mulf %110, %106 : vector<128x64xf32>
    %cst_35 = arith.constant 1.42141378 : f32
    %112 = vector.broadcast %cst_35 : f32 to vector<128x64xf32>
    %113 = arith.addf %111, %112 : vector<128x64xf32>
    %114 = arith.mulf %113, %106 : vector<128x64xf32>
    %cst_36 = arith.constant -0.284496725 : f32
    %115 = vector.broadcast %cst_36 : f32 to vector<128x64xf32>
    %116 = arith.addf %114, %115 : vector<128x64xf32>
    %117 = arith.mulf %116, %106 : vector<128x64xf32>
    %cst_37 = arith.constant 0.254829586 : f32
    %118 = vector.broadcast %cst_37 : f32 to vector<128x64xf32>
    %119 = arith.addf %117, %118 : vector<128x64xf32>
    %120 = arith.mulf %119, %106 : vector<128x64xf32>
    %cst_38 = arith.constant 0.000000e+00 : f32
    %121 = vector.broadcast %cst_38 : f32 to vector<128x64xf32>
    %122 = arith.subf %121, %100 : vector<128x64xf32>
    %123 = arith.mulf %122, %100 : vector<128x64xf32>
    %124 = math.exp %123 : vector<128x64xf32>
    %125 = arith.mulf %120, %124 : vector<128x64xf32>
    %cst_39 = arith.constant 1.000000e+00 : f32
    %126 = vector.broadcast %cst_39 : f32 to vector<128x64xf32>
    %127 = arith.subf %126, %125 : vector<128x64xf32>
    %cst_40 = arith.constant 0.000000e+00 : f32
    %128 = vector.broadcast %cst_40 : f32 to vector<128x64xf32>
    %129 = arith.cmpf oge, %99, %128 : vector<128x64xf32>
    %cst_41 = arith.constant 0.000000e+00 : f32
    %130 = vector.broadcast %cst_41 : f32 to vector<128x64xf32>
    %131 = arith.subf %130, %127 : vector<128x64xf32>
    %132 = arith.select %129, %127, %131 : vector<128x64xi1>, vector<128x64xf32>
    %cst_42 = arith.constant 1.000000e+00 : f32
    %133 = vector.broadcast %cst_42 : f32 to vector<128x64xf32>
    %134 = arith.addf %133, %132 : vector<128x64xf32>
    %135 = arith.mulf %97, %134 : vector<128x64xf32>
    %136 = arith.truncf %135 : vector<128x64xf32> to vector<128x64xbf16>
    %c0_43 = arith.constant 0 : index
    %c0_44 = arith.constant 0 : index
    %137 = vector.load %arg7[%c0_43, %c0_44] : memref<64x16xbf16, #tpu.memory_space<vmem>>, vector<64x16xbf16>
    %cst_45 = arith.constant dense<0.000000e+00> : vector<128x16xf32>
    %138 = tpu.matmul %136, %137, %cst_45 {dimension_numbers = #tpu.dot_dimension_numbers<[1], [0], [0], [1], [0, 0, 1, 1], [], []>} : vector<128x64xbf16>, vector<64x16xbf16>, vector<128x16xf32> -> vector<128x16xf32>
    %139 = vector.extract_strided_slice %41 {offsets = [4, 0], sizes = [1, 16], strides = [1, 1]} : vector<5x16xf32> to vector<1x16xf32>
    %140 = vector.broadcast %139 : vector<1x16xf32> to vector<128x16xf32>
    %141 = arith.addf %138, %140 : vector<128x16xf32>
    %142 = vector.extract_strided_slice %141 {offsets = [0, 0], sizes = [64, 16], strides = [1, 1]} : vector<128x16xf32> to vector<64x16xf32>
    %c0_46 = arith.constant 0 : index
    %c0_47 = arith.constant 0 : index
    %143 = vector.load %arg8[%c0_46, %c0_47] : memref<64x16xf32, #tpu.memory_space<vmem>>, vector<64x16xf32>
    tpu.vector_store %arg8[%c0_46, %c0_47], %142 {strides = array<i32>} : memref<64x16xf32, #tpu.memory_space<vmem>>, vector<64x16xf32>,
    %144 = vector.extract_strided_slice %141 {offsets = [64, 0], sizes = [64, 16], strides = [1, 1]} : vector<128x16xf32> to vector<64x16xf32>
    %c0_48 = arith.constant 0 : index
    %c0_49 = arith.constant 0 : index
    %145 = vector.load %arg9[%c0_48, %c0_49] : memref<64x16xf32, #tpu.memory_space<vmem>>, vector<64x16xf32>
    tpu.vector_store %arg9[%c0_48, %c0_49], %144 {strides = array<i32>} : memref<64x16xf32, #tpu.memory_space<vmem>>, vector<64x16xf32>,
    return
  }
  func.func @transform_0(%arg0: i32) -> (i32, i32) {
    %c0_i32 = arith.constant 0 : i32
    %c0_i32_0 = arith.constant 0 : i32
    return %arg0, %c0_i32 : i32, i32
  }
  func.func @transform_1(%arg0: i32) -> (i32, i32) {
    %c0_i32 = arith.constant 0 : i32
    %c0_i32_0 = arith.constant 0 : i32
    return %arg0, %c0_i32 : i32, i32
  }
  func.func @transform_2(%arg0: i32) -> (i32, i32, i32) {
    %c0_i32 = arith.constant 0 : i32
    %c0_i32_0 = arith.constant 0 : i32
    %c0_i32_1 = arith.constant 0 : i32
    %c0_i32_2 = arith.constant 0 : i32
    return %c0_i32, %c0_i32_0, %c0_i32_1 : i32, i32, i32
  }
  func.func @transform_3(%arg0: i32) -> (i32, i32) {
    %c0_i32 = arith.constant 0 : i32
    %c0_i32_0 = arith.constant 0 : i32
    %c0_i32_1 = arith.constant 0 : i32
    return %c0_i32, %c0_i32_0 : i32, i32
  }
  func.func @transform_4(%arg0: i32) -> (i32, i32) {
    %c0_i32 = arith.constant 0 : i32
    %c0_i32_0 = arith.constant 0 : i32
    %c0_i32_1 = arith.constant 0 : i32
    return %c0_i32, %c0_i32_0 : i32, i32
  }
  func.func @transform_5(%arg0: i32) -> (i32, i32) {
    %c0_i32 = arith.constant 0 : i32
    %c0_i32_0 = arith.constant 0 : i32
    %c0_i32_1 = arith.constant 0 : i32
    return %c0_i32, %c0_i32_0 : i32, i32
  }
  func.func @transform_6(%arg0: i32) -> (i32, i32) {
    %c0_i32 = arith.constant 0 : i32
    %c0_i32_0 = arith.constant 0 : i32
    %c0_i32_1 = arith.constant 0 : i32
    return %c0_i32, %c0_i32_0 : i32, i32
  }
  func.func @transform_7(%arg0: i32) -> (i32, i32) {
    %c0_i32 = arith.constant 0 : i32
    %c0_i32_0 = arith.constant 0 : i32
    return %arg0, %c0_i32 : i32, i32
  }
  func.func @transform_8(%arg0: i32) -> (i32, i32) {
    %c0_i32 = arith.constant 0 : i32
    %c0_i32_0 = arith.constant 0 : i32
    return %arg0, %c0_i32 : i32, i32
  }
}

</mosaic_0001>

<llo_original>
// kernel: tpu_custom_call.1
$region0: #{tpu_custom_call.1}
  #allocation0 [shape = 'u32[]', space=smem, size = 0x4, offset = 0x4, fixed_abs, tag = 'smem constant byte address 0x4 - core index']
  #allocation1 [shape = 'u32[144,128]{1,0:T(1,128)}', space=vmem, size = 0x12000, scoped, tag = 'internal scratch']
  %s0 = inlined_call_operand.vmem [shape: f32[128,16], index: 0, kind: input, shape index: {}]
  %s1 = inlined_call_operand.vmem [shape: f32[128,16], index: 1, kind: input, shape index: {}]
  %s2 = inlined_call_operand.vmem [shape: f32[2,16,16], index: 2, kind: input, shape index: {}]
  %s3 = inlined_call_operand.vmem [shape: f32[5,16], index: 3, kind: input, shape index: {}]
  %s4 = inlined_call_operand.vmem [shape: f32[1,64], index: 4, kind: input, shape index: {}]
  %s5 = inlined_call_operand.vmem [shape: bf16[16,64], index: 5, kind: input, shape index: {}]
  %s6 = inlined_call_operand.vmem [shape: bf16[64,16], index: 6, kind: input, shape index: {}]
  %s7 = inlined_call_operand.vmem [shape: f32[128,16], index: 7, kind: output, shape index: {0}]
  %s8 = inlined_call_operand.vmem [shape: f32[128,16], index: 8, kind: output, shape index: {1}]
  %9 = xla_tuple %s7, %s8
  %s10 = sld [smem:[#allocation0]]
  $region69: #{tpu_custom_call.1} parent=0
    _
  %s12 = ssub.s32 1, %s10
  %s13 = scalar_select 0, %s12, %s10
  loop: start=0, step=1, limit=4
  $region2: #{tpu_custom_call.1} parent=0 // loop_pre_header
    _
  $region3: #{tpu_custom_call.1} parent=0 // loop_header
    %s15 = sphi 0, %s19
    %p16 = scmp.ge.s32.totalorder %s15, 4
    %s25 = sphi 0, %s27
    %s28 = sphi 0, %s25
    %s29 = sphi 0, %s28
    %s45 = sphi 0, %s29
    %s51 = sphi 0, %s53
    %s54 = sphi 0, %s51
    %s55 = sphi 0, %s54
    %s71 = sphi 0, %s55
    %s75 = sphi 0, %s75
    %s77 = sphi 0, %s75
    %s78 = sphi 0, %s77
    %s92 = sphi 0, %s78
    %s96 = sphi 0, %s96
    %s98 = sphi 0, %s96
    %s99 = sphi 0, %s98
    %s113 = sphi 0, %s99
    %s117 = sphi 0, %s117
    %s119 = sphi 0, %s117
    %s120 = sphi 0, %s119
    %s134 = sphi 0, %s120
    %s138 = sphi 0, %s138
    %s140 = sphi 0, %s138
    %s141 = sphi 0, %s140
    %s155 = sphi 0, %s141
    %s159 = sphi 0, %s159
    %s161 = sphi 0, %s159
    %s162 = sphi 0, %s161
    %s176 = sphi 0, %s162
    %s182 = sphi 0, %s184
    %s185 = sphi 0, %s182
    %s186 = sphi 0, %s185
    %s202 = sphi 0, %s186
    %s208 = sphi 0, %s210
    %s211 = sphi 0, %s208
    %s212 = sphi 0, %s211
    %s228 = sphi 0, %s212
  $region4: #{tpu_custom_call.1} parent=0 // loop_header_branch
    %18 = sbr.rel (%p16) target = $region8
  $region5: #{tpu_custom_call.1} parent=0 // loop_body
    %s20 = ssub.s32 %s15, 1
    %s21 = ssub.s32 %s15, 2
    %s22 = sadd.s32 %s15, 1
    %s23 = ssub.s32 %s15, %s22
    %p24 = scmp.eq.s32.totalorder %s23, 0
    %s26 = sadd.s32 %s25, 1
    %s27 = scalar_select %p24, %s25, %s26
    %p30 = pneg %p24
    %p31 = scmp.eq.s32.totalorder %s15, 1
    %p32 = por %p30, %p31
    %p33 = scmp.ne.s32.totalorder %s25, %s28
    %p34 = scmp.eq.s32.totalorder %s15, 0
    %p35 = por %p33, %p34
    %p36 = scmp.ne.s32.totalorder %s25, %s28
    %p37 = scmp.eq.s32.totalorder %s20, 1
    %p38 = por %p36, %p37
    %p39 = scmp.ne.s32.totalorder %s28, %s29
    %p40 = scmp.eq.s32.totalorder %s20, 0
    %p41 = por %p39, %p40
    %p42 = scmp.ne.s32.totalorder %s28, %s29
    %p43 = scmp.eq.s32.totalorder %s21, 1
    %p44 = por %p42, %p43
    %p46 = scmp.ne.s32.totalorder %s29, %s45
    %p47 = scmp.eq.s32.totalorder %s21, 0
    %p48 = por %p46, %p47
    %s49 = ssub.s32 %s15, %s22
    %p50 = scmp.eq.s32.totalorder %s49, 0
    %s52 = sadd.s32 %s51, 1
    %s53 = scalar_select %p50, %s51, %s52
    %p56 = pneg %p50
    %p57 = scmp.eq.s32.totalorder %s15, 1
    %p58 = por %p56, %p57
    %p59 = scmp.ne.s32.totalorder %s51, %s54
    %p60 = scmp.eq.s32.totalorder %s15, 0
    %p61 = por %p59, %p60
    %p62 = scmp.ne.s32.totalorder %s51, %s54
    %p63 = scmp.eq.s32.totalorder %s20, 1
    %p64 = por %p62, %p63
    %p65 = scmp.ne.s32.totalorder %s54, %s55
    %p66 = scmp.eq.s32.totalorder %s20, 0
    %p67 = por %p65, %p66
    %p68 = scmp.ne.s32.totalorder %s54, %s55
    %p69 = scmp.eq.s32.totalorder %s21, 1
    %p70 = por %p68, %p69
    %p72 = scmp.ne.s32.totalorder %s55, %s71
    %p73 = scmp.eq.s32.totalorder %s21, 0
    %p74 = por %p72, %p73
    %s76 = sadd.s32 %s75, 1
    %p79 = scmp.eq.s32.totalorder %s15, 1
    %p80 = scmp.ne.s32.totalorder %s75, %s77
    %p81 = scmp.eq.s32.totalorder %s15, 0
    %p82 = por %p80, %p81
    %p83 = scmp.ne.s32.totalorder %s75, %s77
    %p84 = scmp.eq.s32.totalorder %s20, 1
    %p85 = por %p83, %p84
    %p86 = scmp.ne.s32.totalorder %s77, %s78
    %p87 = scmp.eq.s32.totalorder %s20, 0
    %p88 = por %p86, %p87
    %p89 = scmp.ne.s32.totalorder %s77, %s78
    %p90 = scmp.eq.s32.totalorder %s21, 1
    %p91 = por %p89, %p90
    %p93 = scmp.ne.s32.totalorder %s78, %s92
    %p94 = scmp.eq.s32.totalorder %s21, 0
    %p95 = por %p93, %p94
    %s97 = sadd.s32 %s96, 1
    %p100 = scmp.eq.s32.totalorder %s15, 1
    %p101 = scmp.ne.s32.totalorder %s96, %s98
    %p102 = scmp.eq.s32.totalorder %s15, 0
    %p103 = por %p101, %p102
    %p104 = scmp.ne.s32.totalorder %s96, %s98
    %p105 = scmp.eq.s32.totalorder %s20, 1
    %p106 = por %p104, %p105
    %p107 = scmp.ne.s32.totalorder %s98, %s99
    %p108 = scmp.eq.s32.totalorder %s20, 0
    %p109 = por %p107, %p108
    %p110 = scmp.ne.s32.totalorder %s98, %s99
    %p111 = scmp.eq.s32.totalorder %s21, 1
    %p112 = por %p110, %p111
    %p114 = scmp.ne.s32.totalorder %s99, %s113
    %p115 = scmp.eq.s32.totalorder %s21, 0
    %p116 = por %p114, %p115
    %s118 = sadd.s32 %s117, 1
    %p121 = scmp.eq.s32.totalorder %s15, 1
    %p122 = scmp.ne.s32.totalorder %s117, %s119
    %p123 = scmp.eq.s32.totalorder %s15, 0
    %p124 = por %p122, %p123
    %p125 = scmp.ne.s32.totalorder %s117, %s119
    %p126 = scmp.eq.s32.totalorder %s20, 1
    %p127 = por %p125, %p126
    %p128 = scmp.ne.s32.totalorder %s119, %s120
    %p129 = scmp.eq.s32.totalorder %s20, 0
    %p130 = por %p128, %p129
    %p131 = scmp.ne.s32.totalorder %s119, %s120
    %p132 = scmp.eq.s32.totalorder %s21, 1
    %p133 = por %p131, %p132
    %p135 = scmp.ne.s32.totalorder %s120, %s134
    %p136 = scmp.eq.s32.totalorder %s21, 0
    %p137 = por %p135, %p136
    %s139 = sadd.s32 %s138, 1
    %p142 = scmp.eq.s32.totalorder %s15, 1
    %p143 = scmp.ne.s32.totalorder %s138, %s140
    %p144 = scmp.eq.s32.totalorder %s15, 0
    %p145 = por %p143, %p144
    %p146 = scmp.ne.s32.totalorder %s138, %s140
    %p147 = scmp.eq.s32.totalorder %s20, 1
    %p148 = por %p146, %p147
    %p149 = scmp.ne.s32.totalorder %s140, %s141
    %p150 = scmp.eq.s32.totalorder %s20, 0
    %p151 = por %p149, %p150
    %p152 = scmp.ne.s32.totalorder %s140, %s141
    %p153 = scmp.eq.s32.totalorder %s21, 1
    %p154 = por %p152, %p153
    %p156 = scmp.ne.s32.totalorder %s141, %s155
    %p157 = scmp.eq.s32.totalorder %s21, 0
    %p158 = por %p156, %p157
    %s160 = sadd.s32 %s159, 1
    %p163 = scmp.eq.s32.totalorder %s15, 1
    %p164 = scmp.ne.s32.totalorder %s159, %s161
    %p165 = scmp.eq.s32.totalorder %s15, 0
    %p166 = por %p164, %p165
    %p167 = scmp.ne.s32.totalorder %s159, %s161
    %p168 = scmp.eq.s32.totalorder %s20, 1
    %p169 = por %p167, %p168
    %p170 = scmp.ne.s32.totalorder %s161, %s162
    %p171 = scmp.eq.s32.totalorder %s20, 0
    %p172 = por %p170, %p171
    %p173 = scmp.ne.s32.totalorder %s161, %s162
    %p174 = scmp.eq.s32.totalorder %s21, 1
    %p175 = por %p173, %p174
    %p177 = scmp.ne.s32.totalorder %s162, %s176
    %p178 = scmp.eq.s32.totalorder %s21, 0
    %p179 = por %p177, %p178
    %s180 = ssub.s32 %s15, %s22
    %p181 = scmp.eq.s32.totalorder %s180, 0
    %s183 = sadd.s32 %s182, 1
    %s184 = scalar_select %p181, %s182, %s183
    %p187 = pneg %p181
    %p188 = scmp.eq.s32.totalorder %s15, 1
    %p189 = por %p187, %p188
    %p190 = scmp.ne.s32.totalorder %s182, %s185
    %p191 = scmp.eq.s32.totalorder %s15, 0
    %p192 = por %p190, %p191
    %p193 = scmp.ne.s32.totalorder %s182, %s185
    %p194 = scmp.eq.s32.totalorder %s20, 1
    %p195 = por %p193, %p194
    %p196 = scmp.ne.s32.totalorder %s185, %s186
    %p197 = scmp.eq.s32.totalorder %s20, 0
    %p198 = por %p196, %p197
    %p199 = scmp.ne.s32.totalorder %s185, %s186
    %p200 = scmp.eq.s32.totalorder %s21, 1
    %p201 = por %p199, %p200
    %p203 = scmp.ne.s32.totalorder %s186, %s202
    %p204 = scmp.eq.s32.totalorder %s21, 0
    %p205 = por %p203, %p204
    %s206 = ssub.s32 %s15, %s22
    %p207 = scmp.eq.s32.totalorder %s206, 0
    %s209 = sadd.s32 %s208, 1
    %s210 = scalar_select %p207, %s208, %s209
    %p213 = pneg %p207
    %p214 = scmp.eq.s32.totalorder %s15, 1
    %p215 = por %p213, %p214
    %p216 = scmp.ne.s32.totalorder %s208, %s211
    %p217 = scmp.eq.s32.totalorder %s15, 0
    %p218 = por %p216, %p217
    %p219 = scmp.ne.s32.totalorder %s208, %s211
    %p220 = scmp.eq.s32.totalorder %s20, 1
    %p221 = por %p219, %p220
    %p222 = scmp.ne.s32.totalorder %s211, %s212
    %p223 = scmp.eq.s32.totalorder %s20, 0
    %p224 = por %p222, %p223
    %p225 = scmp.ne.s32.totalorder %s211, %s212
    %p226 = scmp.eq.s32.totalorder %s21, 1
    %p227 = por %p225, %p226
    %p229 = scmp.ne.s32.totalorder %s212, %s228
    %p230 = scmp.eq.s32.totalorder %s21, 0
    %p231 = por %p229, %p230
    %p232 = scmp.le.s32.totalorder 1, %s15
    %p233 = scmp.lt.s32.totalorder %s15, 3
    %p234 = pnand %p232, %p233
    %p235 = pneg %p234
    // Predicated region
    $region9: #{tpu_custom_call.1} parent=5 // pred_check
      _
    $region10: #{tpu_custom_call.1} parent=5 // pred_check_branch
      %237 = sbr.rel (%p234) target = $region12
    $region11: #{tpu_custom_call.1} parent=5 // pred_region
      %s238 = ssub.s32 %s15, 1
      // Predicated region
      $region13: #{tpu_custom_call.1} parent=11 // pred_check
        %p239 = pneg %p88
      $region14: #{tpu_custom_call.1} parent=11 // pred_check_branch
        %241 = sbr.rel (%p239) target = $region16
      $region15: #{tpu_custom_call.1} parent=11 // pred_region
        _
      $region16: #{tpu_custom_call.1} parent=11 // pred_fallthru
        _
      // Predicated region
      $region17: #{tpu_custom_call.1} parent=11 // pred_check
        %p242 = pneg %p109
      $region18: #{tpu_custom_call.1} parent=11 // pred_check_branch
        %244 = sbr.rel (%p242) target = $region20
      $region19: #{tpu_custom_call.1} parent=11 // pred_region
        _
      $region20: #{tpu_custom_call.1} parent=11 // pred_fallthru
        _
      // Predicated region
      $region21: #{tpu_custom_call.1} parent=11 // pred_check
        %p245 = pneg %p130
      $region22: #{tpu_custom_call.1} parent=11 // pred_check_branch
        %247 = sbr.rel (%p245) target = $region24
      $region23: #{tpu_custom_call.1} parent=11 // pred_region
        _
      $region24: #{tpu_custom_call.1} parent=11 // pred_fallthru
        _
      // Predicated region
      $region25: #{tpu_custom_call.1} parent=11 // pred_check
        %p248 = pneg %p151
      $region26: #{tpu_custom_call.1} parent=11 // pred_check_branch
        %250 = sbr.rel (%p248) target = $region28
      $region27: #{tpu_custom_call.1} parent=11 // pred_region
        _
      $region28: #{tpu_custom_call.1} parent=11 // pred_fallthru
        _
      // Predicated region
      $region29: #{tpu_custom_call.1} parent=11 // pred_check
        %p251 = pneg %p172
      $region30: #{tpu_custom_call.1} parent=11 // pred_check_branch
        %253 = sbr.rel (%p251) target = $region32
      $region31: #{tpu_custom_call.1} parent=11 // pred_region
        _
      $region32: #{tpu_custom_call.1} parent=11 // pred_fallthru
        _
    $region12: #{tpu_custom_call.1} parent=5 // pred_fallthru
      _
    %p254 = scmp.lt.s32.totalorder %s15, 2
    // Predicated region
    $region33: #{tpu_custom_call.1} parent=5 // pred_check
      %p255 = pneg %p254
    $region34: #{tpu_custom_call.1} parent=5 // pred_check_branch
      %257 = sbr.rel (%p255) target = $region36
    $region35: #{tpu_custom_call.1} parent=5 // pred_region
      // Predicated region
      $region37: #{tpu_custom_call.1} parent=35 // pred_check
        %p258 = pneg %p35
      $region38: #{tpu_custom_call.1} parent=35 // pred_check_branch
        %260 = sbr.rel (%p258) target = $region40
      $region39: #{tpu_custom_call.1} parent=35 // pred_region
        %s261 = smul.u32 8, %s15
        %p262 = scmp.lt.s32.totalorder %s261, 15
        %s263 = scalar_select %p262, %s261, 15
        %s264 = smul.addr %s263, 8
        %s265 = scalar_lea.vmem %s0, %s264
        %s266 = smul.u32 8, %s15
      $region40: #{tpu_custom_call.1} parent=35 // pred_fallthru
        _
      // Predicated region
      $region41: #{tpu_custom_call.1} parent=35 // pred_check
        %p267 = pneg %p61
      $region42: #{tpu_custom_call.1} parent=35 // pred_check_branch
        %269 = sbr.rel (%p267) target = $region44
      $region43: #{tpu_custom_call.1} parent=35 // pred_region
        %s270 = smul.u32 8, %s15
        %p271 = scmp.lt.s32.totalorder %s270, 15
        %s272 = scalar_select %p271, %s270, 15
        %s273 = smul.addr %s272, 8
        %s274 = scalar_lea.vmem %s1, %s273
        %s275 = smul.u32 8, %s15
      $region44: #{tpu_custom_call.1} parent=35 // pred_fallthru
        _
    $region36: #{tpu_custom_call.1} parent=5 // pred_fallthru
      _
    %p276 = scmp.le.s32.totalorder 1, %s15
    %p277 = scmp.lt.s32.totalorder %s15, 3
    %p278 = pnand %p276, %p277
    %p279 = pneg %p278
    // Predicated region
    $region45: #{tpu_custom_call.1} parent=5 // pred_check
      _
    $region46: #{tpu_custom_call.1} parent=5 // pred_check_branch
      %281 = sbr.rel (%p278) target = $region48
    $region47: #{tpu_custom_call.1} parent=5 // pred_region
      %s282 = ssub.s32 %s15, 1
      %s283 = smul.u32 8, %s20
      %p284 = scmp.lt.s32.totalorder %s283, 15
      %s285 = scalar_select %p284, %s283, 15
      %s286 = smul.addr %s285, 8
      %s287 = scalar_lea.vmem %s0, %s286
      %p288 = pneg %p41
      %p289 = pneg %p38
      %s290 = smul.u32 8, %s20
      %p291 = scmp.lt.s32.totalorder %s290, 15
      %s292 = scalar_select %p291, %s290, 15
      %s293 = smul.addr %s292, 8
      %s294 = scalar_lea.vmem %s1, %s293
      %p295 = pneg %p67
      %p296 = pneg %p64
      %p297 = pneg %p88
      %p298 = pneg %p85
      %p299 = pneg %p109
      %p300 = pneg %p106
      %p301 = pneg %p130
      %p302 = pneg %p127
      %p303 = pneg %p151
      %p304 = pneg %p148
      %p305 = pneg %p172
      %p306 = pneg %p169
      %p307 = pneg %p198
      %p308 = pneg %p195
      %s309 = smul.u32 8, %s20
      %p310 = scmp.lt.s32.totalorder %s309, 15
      %s311 = scalar_select %p310, %s309, 15
      %s312 = smul.addr %s311, 8
      %s313 = scalar_lea.vmem %s7, %s312
      %p314 = pneg %p224
      %p315 = pneg %p221
      %s316 = smul.u32 8, %s20
      %p317 = scmp.lt.s32.totalorder %s316, 15
      %s318 = scalar_select %p317, %s316, 15
      %s319 = smul.addr %s318, 8
      %s320 = scalar_lea.vmem %s8, %s319
      %s321 = smul.u32 8, %s20
      %p322 = scmp.lt.s32.totalorder %s321, 15
      %s323 = scalar_select %p322, %s321, 15
      %s324 = smul.addr %s323, 8
      %s325 = scalar_lea.vmem %s0, %s324
      %s326 = smul.u32 8, %s20
      %s327 = smul.u32 8, %s20
      %p328 = scmp.lt.s32.totalorder %s327, 15
      %s329 = scalar_select %p328, %s327, 15
      %s330 = smul.addr %s329, 8
      %s331 = scalar_lea.vmem %s1, %s330
      %s332 = smul.u32 8, %s20
      %s333 = smul.u32 8, %s20
      %p334 = scmp.lt.s32.totalorder %s333, 15
      %s335 = scalar_select %p334, %s333, 15
      %s336 = smul.addr %s335, 8
      %s337 = scalar_lea.vmem %s7, %s336
      %s338 = smul.u32 8, %s20
      %s339 = smul.u32 8, %s20
      %p340 = scmp.lt.s32.totalorder %s339, 15
      %s341 = scalar_select %p340, %s339, 15
      %s342 = smul.addr %s341, 8
      %s343 = scalar_lea.vmem %s8, %s342
      %s344 = smul.u32 8, %s20
      %v346 = vld [vmem:[%s2] sm:$0xff]
      %v347 = vld [vmem:[%s2 + $0x8] sm:$0xff]
      %s348 = scalar_lea.vmem %s2, 16
      %v349 = vld [vmem:[%s348] sm:$0xff]
      %v350 = vld [vmem:[%s348 + $0x8] sm:$0xff]
      %v351 = vld [vmem:[%s325] sm:$0xff]
      %v352 = vld [vmem:[%s325 + $0x8] sm:$0xff]
      %v353 = vld [vmem:[%s325 + $0x10] sm:$0xff]
      %v354 = vld [vmem:[%s325 + $0x18] sm:$0xff]
      %v355 = vld [vmem:[%s325 + $0x20] sm:$0xff]
      %v356 = vld [vmem:[%s325 + $0x28] sm:$0xff]
      %v357 = vld [vmem:[%s325 + $0x30] sm:$0xff]
      %v358 = vld [vmem:[%s325 + $0x38] sm:$0xff]
      %v359 = vld [vmem:[%s331] sm:$0xff]
      %v360 = vld [vmem:[%s331 + $0x8] sm:$0xff]
      %v361 = vld [vmem:[%s331 + $0x10] sm:$0xff]
      %v362 = vld [vmem:[%s331 + $0x18] sm:$0xff]
      %v363 = vld [vmem:[%s331 + $0x20] sm:$0xff]
      %v364 = vld [vmem:[%s331 + $0x28] sm:$0xff]
      %v365 = vld [vmem:[%s331 + $0x30] sm:$0xff]
      %v366 = vld [vmem:[%s331 + $0x38] sm:$0xff]
      %vm367 = vcmask 130048
      %v369 = vsel %vm367, %v351, 0
      %v372 = vsel %vm367, %v352, 0
      %v375 = vsel %vm367, %v353, 0
      %v378 = vsel %vm367, %v354, 0
      %v381 = vsel %vm367, %v355, 0
      %v384 = vsel %vm367, %v356, 0
      %v387 = vsel %vm367, %v357, 0
      %v390 = vsel %vm367, %v358, 0
      %v393 = vsel %vm367, %v359, 0
      %v396 = vsel %vm367, %v360, 0
      %v399 = vsel %vm367, %v361, 0
      %v402 = vsel %vm367, %v362, 0
      %v405 = vsel %vm367, %v363, 0
      %v408 = vsel %vm367, %v364, 0
      %v411 = vsel %vm367, %v365, 0
      %v414 = vsel %vm367, %v366, 0
      %416 = vmatprep.subr.mxu0 0.0
      %417 = vmatpush1.msra.mxu0 %v346
      %418 = vmatprep.subr.mxu0 0.0
      %419 = vmatpush1.msra.mxu0 %v347
      %420 = vmatprep.subr.mxu0 0.0
      %421 = vmatpush1.msra.mxu0 0.0
      %422 = vmatprep.subr.mxu0 0.0
      %423 = vmatpush1.msra.mxu0 0.0
      %424 = vmatprep.subr.mxu0 0.0
      %425 = vmatpush1.msra.mxu0 0.0
      %426 = vmatprep.subr.mxu0 0.0
      %427 = vmatpush1.msra.mxu0 0.0
      %428 = vmatprep.subr.mxu0 0.0
      %429 = vmatpush1.msra.mxu0 0.0
      %430 = vmatprep.subr.mxu0 0.0
      %431 = vmatpush1.msra.mxu0 0.0
      %432 = vmatprep.subr.mxu0 0.0
      %433 = vmatpush1.msra.mxu0 0.0
      %434 = vmatprep.subr.mxu0 0.0
      %435 = vmatpush1.msra.mxu0 0.0
      %436 = vmatprep.subr.mxu0 0.0
      %437 = vmatpush1.msra.mxu0 0.0
      %438 = vmatprep.subr.mxu0 0.0
      %439 = vmatpush1.msra.mxu0 0.0
      %440 = vmatprep.subr.mxu0 0.0
      %441 = vmatpush1.msra.mxu0 0.0
      %442 = vmatprep.subr.mxu0 0.0
      %443 = vmatpush1.msra.mxu0 0.0
      %444 = vmatprep.subr.mxu0 0.0
      %445 = vmatpush1.msra.mxu0 0.0
      %446 = vmatprep.subr.mxu0 0.0
      %447 = vmatpush1.msra.mxu0 0.0
      %448 = vmatprep.subr.mxu0 0.0
      %449 = vmatpush1.msra.mxu0 0.0
      %450 = vmatprep.subr.mxu0 0.0
      %451 = vmatpush1.msra.mxu0 0.0
      %452 = vmatprep.subr.mxu0 0.0
      %453 = vmatpush1.msra.mxu0 0.0
      %454 = vmatprep.subr.mxu0 0.0
      %455 = vmatpush1.msra.mxu0 0.0
      %456 = vmatprep.subr.mxu0 0.0
      %457 = vmatpush1.msra.mxu0 0.0
      %458 = vmatprep.subr.mxu0 0.0
      %459 = vmatpush1.msra.mxu0 0.0
      %460 = vmatprep.subr.mxu0 0.0
      %461 = vmatpush1.msra.mxu0 0.0
      %462 = vmatprep.subr.mxu0 0.0
      %463 = vmatpush1.msra.mxu0 0.0
      %464 = vmatprep.subr.mxu0 0.0
      %465 = vmatpush1.msra.mxu0 0.0
      %466 = vmatprep.subr.mxu0 0.0
      %467 = vmatpush1.msra.mxu0 0.0
      %468 = vmatprep.subr.mxu0 0.0
      %469 = vmatpush1.msra.mxu0 0.0
      %470 = vmatprep.subr.mxu0 0.0
      %471 = vmatpush1.msra.mxu0 0.0
      %472 = vmatprep.subr.mxu0 0.0
      %473 = vmatpush1.msra.mxu0 0.0
      %474 = vmatprep.subr.mxu0 0.0
      %475 = vmatpush1.msra.mxu0 0.0
      %476 = vmatprep.subr.mxu0 0.0
      %477 = vmatpush1.msra.mxu0 0.0
      %478 = vmatprep.subr.mxu0 0.0
      %479 = vmatpush1.msra.mxu0 0.0
      %480 = vmatprep.mubr.f32.mxu0 0.0
      %481 = vmatmul.mubr.f32.gmra.mrb[0].mxu0 %v369
      %v482 = vpop.f32.mrb[0].mxu0
      %v483 = vadd.f32 0.0, %v482
      %v484 = vpop.f32.mrb[0].mxu0
      %485 = vmatprep.mubr.f32.mxu0 0.0
      %486 = vmatmul.mubr.f32.gmra.mrb[0].mxu0 %v372
      %v487 = vpop.f32.mrb[0].mxu0
      %v488 = vadd.f32 0.0, %v487
      %v489 = vpop.f32.mrb[0].mxu0
      %490 = vmatprep.mubr.f32.mxu0 0.0
      %491 = vmatmul.mubr.f32.gmra.mrb[0].mxu0 %v375
      %v492 = vpop.f32.mrb[0].mxu0
      %v493 = vadd.f32 0.0, %v492
      %v494 = vpop.f32.mrb[0].mxu0
      %495 = vmatprep.mubr.f32.mxu0 0.0
      %496 = vmatmul.mubr.f32.gmra.mrb[0].mxu0 %v378
      %v497 = vpop.f32.mrb[0].mxu0
      %v498 = vadd.f32 0.0, %v497
      %v499 = vpop.f32.mrb[0].mxu0
      %500 = vmatprep.mubr.f32.mxu0 0.0
      %501 = vmatmul.mubr.f32.gmra.mrb[0].mxu0 %v381
      %v502 = vpop.f32.mrb[0].mxu0
      %v503 = vadd.f32 0.0, %v502
      %v504 = vpop.f32.mrb[0].mxu0
      %505 = vmatprep.mubr.f32.mxu0 0.0
      %506 = vmatmul.mubr.f32.gmra.mrb[0].mxu0 %v384
      %v507 = vpop.f32.mrb[0].mxu0
      %v508 = vadd.f32 0.0, %v507
      %v509 = vpop.f32.mrb[0].mxu0
      %510 = vmatprep.mubr.f32.mxu0 0.0
      %511 = vmatmul.mubr.f32.gmra.mrb[0].mxu0 %v387
      %v512 = vpop.f32.mrb[0].mxu0
      %v513 = vadd.f32 0.0, %v512
      %v514 = vpop.f32.mrb[0].mxu0
      %515 = vmatprep.mubr.f32.mxu0 0.0
      %516 = vmatmul.mubr.f32.gmra.mrb[0].mxu0 %v390
      %v517 = vpop.f32.mrb[0].mxu0
      %v518 = vadd.f32 0.0, %v517
      %v519 = vpop.f32.mrb[0].mxu0
      %520 = vmatprep.mubr.f32.mxu0 0.0
      %521 = vmatmul.mubr.f32.gmra.mrb[0].mxu0 %v393
      %v522 = vpop.f32.mrb[0].mxu0
      %v523 = vadd.f32 0.0, %v522
      %v524 = vpop.f32.mrb[0].mxu0
      %525 = vmatprep.mubr.f32.mxu0 0.0
      %526 = vmatmul.mubr.f32.gmra.mrb[0].mxu0 %v396
      %v527 = vpop.f32.mrb[0].mxu0
      %v528 = vadd.f32 0.0, %v527
      %v529 = vpop.f32.mrb[0].mxu0
      %530 = vmatprep.mubr.f32.mxu0 0.0
      %531 = vmatmul.mubr.f32.gmra.mrb[0].mxu0 %v399
      %v532 = vpop.f32.mrb[0].mxu0
      %v533 = vadd.f32 0.0, %v532
      %v534 = vpop.f32.mrb[0].mxu0
      %535 = vmatprep.mubr.f32.mxu0 0.0
      %536 = vmatmul.mubr.f32.gmra.mrb[0].mxu0 %v402
      %v537 = vpop.f32.mrb[0].mxu0
      %v538 = vadd.f32 0.0, %v537
      %v539 = vpop.f32.mrb[0].mxu0
      %540 = vmatprep.mubr.f32.mxu0 0.0
      %541 = vmatmul.mubr.f32.gmra.mrb[0].mxu0 %v405
      %v542 = vpop.f32.mrb[0].mxu0
      %v543 = vadd.f32 0.0, %v542
      %v544 = vpop.f32.mrb[0].mxu0
      %545 = vmatprep.mubr.f32.mxu0 0.0
      %546 = vmatmul.mubr.f32.gmra.mrb[0].mxu0 %v408
      %v547 = vpop.f32.mrb[0].mxu0
      %v548 = vadd.f32 0.0, %v547
      %v549 = vpop.f32.mrb[0].mxu0
      %550 = vmatprep.mubr.f32.mxu0 0.0
      %551 = vmatmul.mubr.f32.gmra.mrb[0].mxu0 %v411
      %v552 = vpop.f32.mrb[0].mxu0
      %v553 = vadd.f32 0.0, %v552
      %v554 = vpop.f32.mrb[0].mxu0
      %555 = vmatprep.mubr.f32.mxu0 0.0
      %556 = vmatmul.mubr.f32.gmra.mrb[0].mxu0 %v414
      %v557 = vpop.f32.mrb[0].mxu0
      %v558 = vadd.f32 0.0, %v557
      %v559 = vpop.f32.mrb[0].mxu0
      %560 = vdwg.mxu0
      %561 = vmatprep.subr.mxu0 0.0
      %562 = vmatpush1.msra.mxu0 %v349
      %563 = vmatprep.subr.mxu0 0.0
      %564 = vmatpush1.msra.mxu0 %v350
      %565 = vmatprep.subr.mxu0 0.0
      %566 = vmatpush1.msra.mxu0 0.0
      %567 = vmatprep.subr.mxu0 0.0
      %568 = vmatpush1.msra.mxu0 0.0
      %569 = vmatprep.subr.mxu0 0.0
      %570 = vmatpush1.msra.mxu0 0.0
      %571 = vmatprep.subr.mxu0 0.0
      %572 = vmatpush1.msra.mxu0 0.0
      %573 = vmatprep.subr.mxu0 0.0
      %574 = vmatpush1.msra.mxu0 0.0
      %575 = vmatprep.subr.mxu0 0.0
      %576 = vmatpush1.msra.mxu0 0.0
      %577 = vmatprep.subr.mxu0 0.0
      %578 = vmatpush1.msra.mxu0 0.0
      %579 = vmatprep.subr.mxu0 0.0
      %580 = vmatpush1.msra.mxu0 0.0
      %581 = vmatprep.subr.mxu0 0.0
      %582 = vmatpush1.msra.mxu0 0.0
      %583 = vmatprep.subr.mxu0 0.0
      %584 = vmatpush1.msra.mxu0 0.0
      %585 = vmatprep.subr.mxu0 0.0
      %586 = vmatpush1.msra.mxu0 0.0
      %587 = vmatprep.subr.mxu0 0.0
      %588 = vmatpush1.msra.mxu0 0.0
      %589 = vmatprep.subr.mxu0 0.0
      %590 = vmatpush1.msra.mxu0 0.0
      %591 = vmatprep.subr.mxu0 0.0
      %592 = vmatpush1.msra.mxu0 0.0
      %593 = vmatprep.subr.mxu0 0.0
      %594 = vmatpush1.msra.mxu0 0.0
      %595 = vmatprep.subr.mxu0 0.0
      %596 = vmatpush1.msra.mxu0 0.0
      %597 = vmatprep.subr.mxu0 0.0
      %598 = vmatpush1.msra.mxu0 0.0
      %599 = vmatprep.subr.mxu0 0.0
      %600 = vmatpush1.msra.mxu0 0.0
      %601 = vmatprep.subr.mxu0 0.0
      %602 = vmatpush1.msra.mxu0 0.0
      %603 = vmatprep.subr.mxu0 0.0
      %604 = vmatpush1.msra.mxu0 0.0
      %605 = vmatprep.subr.mxu0 0.0
      %606 = vmatpush1.msra.mxu0 0.0
      %607 = vmatprep.subr.mxu0 0.0
      %608 = vmatpush1.msra.mxu0 0.0
      %609 = vmatprep.subr.mxu0 0.0
      %610 = vmatpush1.msra.mxu0 0.0
      %611 = vmatprep.subr.mxu0 0.0
      %612 = vmatpush1.msra.mxu0 0.0
      %613 = vmatprep.subr.mxu0 0.0
      %614 = vmatpush1.msra.mxu0 0.0
      %615 = vmatprep.subr.mxu0 0.0
      %616 = vmatpush1.msra.mxu0 0.0
      %617 = vmatprep.subr.mxu0 0.0
      %618 = vmatpush1.msra.mxu0 0.0
      %619 = vmatprep.subr.mxu0 0.0
      %620 = vmatpush1.msra.mxu0 0.0
      %621 = vmatprep.subr.mxu0 0.0
      %622 = vmatpush1.msra.mxu0 0.0
      %623 = vmatprep.subr.mxu0 0.0
      %624 = vmatpush1.msra.mxu0 0.0
      %625 = vmatprep.mubr.f32.mxu0 0.0
      %626 = vmatmul.mubr.f32.gmra.mrb[0].mxu0 %v369
      %v627 = vpop.f32.mrb[0].mxu0
      %v628 = vadd.f32 0.0, %v627
      %v629 = vpop.f32.mrb[0].mxu0
      %630 = vmatprep.mubr.f32.mxu0 0.0
      %631 = vmatmul.mubr.f32.gmra.mrb[0].mxu0 %v372
      %v632 = vpop.f32.mrb[0].mxu0
      %v633 = vadd.f32 0.0, %v632
      %v634 = vpop.f32.mrb[0].mxu0
      %635 = vmatprep.mubr.f32.mxu0 0.0
      %636 = vmatmul.mubr.f32.gmra.mrb[0].mxu0 %v375
      %v637 = vpop.f32.mrb[0].mxu0
      %v638 = vadd.f32 0.0, %v637
      %v639 = vpop.f32.mrb[0].mxu0
      %640 = vmatprep.mubr.f32.mxu0 0.0
      %641 = vmatmul.mubr.f32.gmra.mrb[0].mxu0 %v378
      %v642 = vpop.f32.mrb[0].mxu0
      %v643 = vadd.f32 0.0, %v642
      %v644 = vpop.f32.mrb[0].mxu0
      %645 = vmatprep.mubr.f32.mxu0 0.0
      %646 = vmatmul.mubr.f32.gmra.mrb[0].mxu0 %v381
      %v647 = vpop.f32.mrb[0].mxu0
      %v648 = vadd.f32 0.0, %v647
      %v649 = vpop.f32.mrb[0].mxu0
      %650 = vmatprep.mubr.f32.mxu0 0.0
      %651 = vmatmul.mubr.f32.gmra.mrb[0].mxu0 %v384
      %v652 = vpop.f32.mrb[0].mxu0
      %v653 = vadd.f32 0.0, %v652
      %v654 = vpop.f32.mrb[0].mxu0
      %655 = vmatprep.mubr.f32.mxu0 0.0
      %656 = vmatmul.mubr.f32.gmra.mrb[0].mxu0 %v387
      %v657 = vpop.f32.mrb[0].mxu0
      %v658 = vadd.f32 0.0, %v657
      %v659 = vpop.f32.mrb[0].mxu0
      %660 = vmatprep.mubr.f32.mxu0 0.0
      %661 = vmatmul.mubr.f32.gmra.mrb[0].mxu0 %v390
      %v662 = vpop.f32.mrb[0].mxu0
      %v663 = vadd.f32 0.0, %v662
      %v664 = vpop.f32.mrb[0].mxu0
      %665 = vmatprep.mubr.f32.mxu0 0.0
      %666 = vmatmul.mubr.f32.gmra.mrb[0].mxu0 %v393
      %v667 = vpop.f32.mrb[0].mxu0
      %v668 = vadd.f32 0.0, %v667
      %v669 = vpop.f32.mrb[0].mxu0
      %670 = vmatprep.mubr.f32.mxu0 0.0
      %671 = vmatmul.mubr.f32.gmra.mrb[0].mxu0 %v396
      %v672 = vpop.f32.mrb[0].mxu0
      %v673 = vadd.f32 0.0, %v672
      %v674 = vpop.f32.mrb[0].mxu0
      %675 = vmatprep.mubr.f32.mxu0 0.0
      %676 = vmatmul.mubr.f32.gmra.mrb[0].mxu0 %v399
      %v677 = vpop.f32.mrb[0].mxu0
      %v678 = vadd.f32 0.0, %v677
      %v679 = vpop.f32.mrb[0].mxu0
      %680 = vmatprep.mubr.f32.mxu0 0.0
      %681 = vmatmul.mubr.f32.gmra.mrb[0].mxu0 %v402
      %v682 = vpop.f32.mrb[0].mxu0
      %v683 = vadd.f32 0.0, %v682
      %v684 = vpop.f32.mrb[0].mxu0
      %685 = vmatprep.mubr.f32.mxu0 0.0
      %686 = vmatmul.mubr.f32.gmra.mrb[0].mxu0 %v405
      %v687 = vpop.f32.mrb[0].mxu0
      %v688 = vadd.f32 0.0, %v687
      %v689 = vpop.f32.mrb[0].mxu0
      %690 = vmatprep.mubr.f32.mxu0 0.0
      %691 = vmatmul.mubr.f32.gmra.mrb[0].mxu0 %v408
      %v692 = vpop.f32.mrb[0].mxu0
      %v693 = vadd.f32 0.0, %v692
      %v694 = vpop.f32.mrb[0].mxu0
      %695 = vmatprep.mubr.f32.mxu0 0.0
      %696 = vmatmul.mubr.f32.gmra.mrb[0].mxu0 %v411
      %v697 = vpop.f32.mrb[0].mxu0
      %v698 = vadd.f32 0.0, %v697
      %v699 = vpop.f32.mrb[0].mxu0
      %700 = vmatprep.mubr.f32.mxu0 0.0
      %701 = vmatmul.mubr.f32.gmra.mrb[0].mxu0 %v414
      %v702 = vpop.f32.mrb[0].mxu0
      %v703 = vadd.f32 0.0, %v702
      %v704 = vpop.f32.mrb[0].mxu0
      %705 = vdwg.mxu0
      %v706 = vsub.f32 %v483, %v668
      %v707 = vsub.f32 %v488, %v673
      %v708 = vsub.f32 %v493, %v678
      %v709 = vsub.f32 %v498, %v683
      %v710 = vsub.f32 %v503, %v688
      %v711 = vsub.f32 %v508, %v693
      %v712 = vsub.f32 %v513, %v698
      %v713 = vsub.f32 %v518, %v703
      %v714 = vadd.f32 %v628, %v523
      %v715 = vadd.f32 %v633, %v528
      %v716 = vadd.f32 %v638, %v533
      %v717 = vadd.f32 %v643, %v538
      %v718 = vadd.f32 %v648, %v543
      %v719 = vadd.f32 %v653, %v548
      %v720 = vadd.f32 %v658, %v553
      %v721 = vadd.f32 %v663, %v558
      %722 = vxpose.xlu0.b32.start [1/16] %v706, 128
      %723 = vxpose.xlu0.b32.cont [2/16] %v707, 128
      %724 = vxpose.xlu0.b32.cont [3/16] 0.0, 128
      %725 = vxpose.xlu0.b32.cont [4/16] 0.0, 128
      %726 = vxpose.xlu0.b32.cont [5/16] 0.0, 128
      %727 = vxpose.xlu0.b32.cont [6/16] 0.0, 128
      %728 = vxpose.xlu0.b32.cont [7/16] 0.0, 128
      %729 = vxpose.xlu0.b32.cont [8/16] 0.0, 128
      %730 = vxpose.xlu0.b32.cont [9/16] 0.0, 128
      %731 = vxpose.xlu0.b32.cont [10/16] 0.0, 128
      %732 = vxpose.xlu0.b32.cont [11/16] 0.0, 128
      %733 = vxpose.xlu0.b32.cont [12/16] 0.0, 128
      %734 = vxpose.xlu0.b32.cont [13/16] 0.0, 128
      %735 = vxpose.xlu0.b32.cont [14/16] 0.0, 128
      %736 = vxpose.xlu0.b32.cont [15/16] 0.0, 128
      %737 = vxpose.xlu0.b32.end [16/16] 0.0, 128
      %v738 = vpop.trf.xlu0
      %v739 = vpop.trf.xlu0
      %v740 = vpop.trf.xlu0
      %v741 = vpop.trf.xlu0
      %v742 = vpop.trf.xlu0
      %v743 = vpop.trf.xlu0
      %v744 = vpop.trf.xlu0
      %v745 = vpop.trf.xlu0
      %v746 = vpop.trf.xlu0
      %v747 = vpop.trf.xlu0
      %v748 = vpop.trf.xlu0
      %v749 = vpop.trf.xlu0
      %v750 = vpop.trf.xlu0
      %v751 = vpop.trf.xlu0
      %v752 = vpop.trf.xlu0
      %v753 = vpop.trf.xlu0
      %754 = vxpose.xlu0.b32.start [1/16] %v708, 128
      %755 = vxpose.xlu0.b32.cont [2/16] %v709, 128
      %756 = vxpose.xlu0.b32.cont [3/16] 0.0, 128
      %757 = vxpose.xlu0.b32.cont [4/16] 0.0, 128
      %758 = vxpose.xlu0.b32.cont [5/16] 0.0, 128
      %759 = vxpose.xlu0.b32.cont [6/16] 0.0, 128
      %760 = vxpose.xlu0.b32.cont [7/16] 0.0, 128
      %761 = vxpose.xlu0.b32.cont [8/16] 0.0, 128
      %762 = vxpose.xlu0.b32.cont [9/16] 0.0, 128
      %763 = vxpose.xlu0.b32.cont [10/16] 0.0, 128
      %764 = vxpose.xlu0.b32.cont [11/16] 0.0, 128
      %765 = vxpose.xlu0.b32.cont [12/16] 0.0, 128
      %766 = vxpose.xlu0.b32.cont [13/16] 0.0, 128
      %767 = vxpose.xlu0.b32.cont [14/16] 0.0, 128
      %768 = vxpose.xlu0.b32.cont [15/16] 0.0, 128
      %769 = vxpose.xlu0.b32.end [16/16] 0.0, 128
      %v770 = vpop.trf.xlu0
      %v771 = vpop.trf.xlu0
      %v772 = vpop.trf.xlu0
      %v773 = vpop.trf.xlu0
      %v774 = vpop.trf.xlu0
      %v775 = vpop.trf.xlu0
      %v776 = vpop.trf.xlu0
      %v777 = vpop.trf.xlu0
      %v778 = vpop.trf.xlu0
      %v779 = vpop.trf.xlu0
      %v780 = vpop.trf.xlu0
      %v781 = vpop.trf.xlu0
      %v782 = vpop.trf.xlu0
      %v783 = vpop.trf.xlu0
      %v784 = vpop.trf.xlu0
      %v785 = vpop.trf.xlu0
      %786 = vxpose.xlu0.b32.start [1/16] %v710, 128
      %787 = vxpose.xlu0.b32.cont [2/16] %v711, 128
      %788 = vxpose.xlu0.b32.cont [3/16] 0.0, 128
      %789 = vxpose.xlu0.b32.cont [4/16] 0.0, 128
      %790 = vxpose.xlu0.b32.cont [5/16] 0.0, 128
      %791 = vxpose.xlu0.b32.cont [6/16] 0.0, 128
      %792 = vxpose.xlu0.b32.cont [7/16] 0.0, 128
      %793 = vxpose.xlu0.b32.cont [8/16] 0.0, 128
      %794 = vxpose.xlu0.b32.cont [9/16] 0.0, 128
      %795 = vxpose.xlu0.b32.cont [10/16] 0.0, 128
      %796 = vxpose.xlu0.b32.cont [11/16] 0.0, 128
      %797 = vxpose.xlu0.b32.cont [12/16] 0.0, 128
      %798 = vxpose.xlu0.b32.cont [13/16] 0.0, 128
      %799 = vxpose.xlu0.b32.cont [14/16] 0.0, 128
      %800 = vxpose.xlu0.b32.cont [15/16] 0.0, 128
      %801 = vxpose.xlu0.b32.end [16/16] 0.0, 128
      %v802 = vpop.trf.xlu0
      %v803 = vpop.trf.xlu0
      %v804 = vpop.trf.xlu0
      %v805 = vpop.trf.xlu0
      %v806 = vpop.trf.xlu0
      %v807 = vpop.trf.xlu0
      %v808 = vpop.trf.xlu0
      %v809 = vpop.trf.xlu0
      %v810 = vpop.trf.xlu0
      %v811 = vpop.trf.xlu0
      %v812 = vpop.trf.xlu0
      %v813 = vpop.trf.xlu0
      %v814 = vpop.trf.xlu0
      %v815 = vpop.trf.xlu0
      %v816 = vpop.trf.xlu0
      %v817 = vpop.trf.xlu0
      %818 = vxpose.xlu0.b32.start [1/16] %v712, 128
      %819 = vxpose.xlu0.b32.cont [2/16] %v713, 128
      %820 = vxpose.xlu0.b32.cont [3/16] 0.0, 128
      %821 = vxpose.xlu0.b32.cont [4/16] 0.0, 128
      %822 = vxpose.xlu0.b32.cont [5/16] 0.0, 128
      %823 = vxpose.xlu0.b32.cont [6/16] 0.0, 128
      %824 = vxpose.xlu0.b32.cont [7/16] 0.0, 128
      %825 = vxpose.xlu0.b32.cont [8/16] 0.0, 128
      %826 = vxpose.xlu0.b32.cont [9/16] 0.0, 128
      %827 = vxpose.xlu0.b32.cont [10/16] 0.0, 128
      %828 = vxpose.xlu0.b32.cont [11/16] 0.0, 128
      %829 = vxpose.xlu0.b32.cont [12/16] 0.0, 128
      %830 = vxpose.xlu0.b32.cont [13/16] 0.0, 128
      %831 = vxpose.xlu0.b32.cont [14/16] 0.0, 128
      %832 = vxpose.xlu0.b32.cont [15/16] 0.0, 128
      %833 = vxpose.xlu0.b32.end [16/16] 0.0, 128
      %v834 = vpop.trf.xlu0
      %v835 = vpop.trf.xlu0
      %v836 = vpop.trf.xlu0
      %v837 = vpop.trf.xlu0
      %v838 = vpop.trf.xlu0
      %v839 = vpop.trf.xlu0
      %v840 = vpop.trf.xlu0
      %v841 = vpop.trf.xlu0
      %v842 = vpop.trf.xlu0
      %v843 = vpop.trf.xlu0
      %v844 = vpop.trf.xlu0
      %v845 = vpop.trf.xlu0
      %v846 = vpop.trf.xlu0
      %v847 = vpop.trf.xlu0
      %v848 = vpop.trf.xlu0
      %v849 = vpop.trf.xlu0
      %850 = vxpose.xlu0.b32.start [1/16] %v714, 128
      %851 = vxpose.xlu0.b32.cont [2/16] %v715, 128
      %852 = vxpose.xlu0.b32.cont [3/16] 0.0, 128
      %853 = vxpose.xlu0.b32.cont [4/16] 0.0, 128
      %854 = vxpose.xlu0.b32.cont [5/16] 0.0, 128
      %855 = vxpose.xlu0.b32.cont [6/16] 0.0, 128
      %856 = vxpose.xlu0.b32.cont [7/16] 0.0, 128
      %857 = vxpose.xlu0.b32.cont [8/16] 0.0, 128
      %858 = vxpose.xlu0.b32.cont [9/16] 0.0, 128
      %859 = vxpose.xlu0.b32.cont [10/16] 0.0, 128
      %860 = vxpose.xlu0.b32.cont [11/16] 0.0, 128
      %861 = vxpose.xlu0.b32.cont [12/16] 0.0, 128
      %862 = vxpose.xlu0.b32.cont [13/16] 0.0, 128
      %863 = vxpose.xlu0.b32.cont [14/16] 0.0, 128
      %864 = vxpose.xlu0.b32.cont [15/16] 0.0, 128
      %865 = vxpose.xlu0.b32.end [16/16] 0.0, 128
      %v866 = vpop.trf.xlu0
      %v867 = vpop.trf.xlu0
      %v868 = vpop.trf.xlu0
      %v869 = vpop.trf.xlu0
      %v870 = vpop.trf.xlu0
      %v871 = vpop.trf.xlu0
      %v872 = vpop.trf.xlu0
      %v873 = vpop.trf.xlu0
      %v874 = vpop.trf.xlu0
      %v875 = vpop.trf.xlu0
      %v876 = vpop.trf.xlu0
      %v877 = vpop.trf.xlu0
      %v878 = vpop.trf.xlu0
      %v879 = vpop.trf.xlu0
      %v880 = vpop.trf.xlu0
      %v881 = vpop.trf.xlu0
      %882 = vxpose.xlu0.b32.start [1/16] %v716, 128
      %883 = vxpose.xlu0.b32.cont [2/16] %v717, 128
      %884 = vxpose.xlu0.b32.cont [3/16] 0.0, 128
      %885 = vxpose.xlu0.b32.cont [4/16] 0.0, 128
      %886 = vxpose.xlu0.b32.cont [5/16] 0.0, 128
      %887 = vxpose.xlu0.b32.cont [6/16] 0.0, 128
      %888 = vxpose.xlu0.b32.cont [7/16] 0.0, 128
      %889 = vxpose.xlu0.b32.cont [8/16] 0.0, 128
      %890 = vxpose.xlu0.b32.cont [9/16] 0.0, 128
      %891 = vxpose.xlu0.b32.cont [10/16] 0.0, 128
      %892 = vxpose.xlu0.b32.cont [11/16] 0.0, 128
      %893 = vxpose.xlu0.b32.cont [12/16] 0.0, 128
      %894 = vxpose.xlu0.b32.cont [13/16] 0.0, 128
      %895 = vxpose.xlu0.b32.cont [14/16] 0.0, 128
      %896 = vxpose.xlu0.b32.cont [15/16] 0.0, 128
      %897 = vxpose.xlu0.b32.end [16/16] 0.0, 128
      %v898 = vpop.trf.xlu0
      %v899 = vpop.trf.xlu0
      %v900 = vpop.trf.xlu0
      %v901 = vpop.trf.xlu0
      %v902 = vpop.trf.xlu0
      %v903 = vpop.trf.xlu0
      %v904 = vpop.trf.xlu0
      %v905 = vpop.trf.xlu0
      %v906 = vpop.trf.xlu0
      %v907 = vpop.trf.xlu0
      %v908 = vpop.trf.xlu0
      %v909 = vpop.trf.xlu0
      %v910 = vpop.trf.xlu0
      %v911 = vpop.trf.xlu0
      %v912 = vpop.trf.xlu0
      %v913 = vpop.trf.xlu0
      %914 = vxpose.xlu0.b32.start [1/16] %v718, 128
      %915 = vxpose.xlu0.b32.cont [2/16] %v719, 128
      %916 = vxpose.xlu0.b32.cont [3/16] 0.0, 128
      %917 = vxpose.xlu0.b32.cont [4/16] 0.0, 128
      %918 = vxpose.xlu0.b32.cont [5/16] 0.0, 128
      %919 = vxpose.xlu0.b32.cont [6/16] 0.0, 128
      %920 = vxpose.xlu0.b32.cont [7/16] 0.0, 128
      %921 = vxpose.xlu0.b32.cont [8/16] 0.0, 128
      %922 = vxpose.xlu0.b32.cont [9/16] 0.0, 128
      %923 = vxpose.xlu0.b32.cont [10/16] 0.0, 128
      %924 = vxpose.xlu0.b32.cont [11/16] 0.0, 128
      %925 = vxpose.xlu0.b32.cont [12/16] 0.0, 128
      %926 = vxpose.xlu0.b32.cont [13/16] 0.0, 128
      %927 = vxpose.xlu0.b32.cont [14/16] 0.0, 128
      %928 = vxpose.xlu0.b32.cont [15/16] 0.0, 128
      %929 = vxpose.xlu0.b32.end [16/16] 0.0, 128
      %v930 = vpop.trf.xlu0
      %v931 = vpop.trf.xlu0
      %v932 = vpop.trf.xlu0
      %v933 = vpop.trf.xlu0
      %v934 = vpop.trf.xlu0
      %v935 = vpop.trf.xlu0
      %v936 = vpop.trf.xlu0
      %v937 = vpop.trf.xlu0
      %v938 = vpop.trf.xlu0
      %v939 = vpop.trf.xlu0
      %v940 = vpop.trf.xlu0
      %v941 = vpop.trf.xlu0
      %v942 = vpop.trf.xlu0
      %v943 = vpop.trf.xlu0
      %v944 = vpop.trf.xlu0
      %v945 = vpop.trf.xlu0
      %946 = vxpose.xlu0.b32.start [1/16] %v720, 128
      %947 = vxpose.xlu0.b32.cont [2/16] %v721, 128
      %948 = vxpose.xlu0.b32.cont [3/16] 0.0, 128
      %949 = vxpose.xlu0.b32.cont [4/16] 0.0, 128
      %950 = vxpose.xlu0.b32.cont [5/16] 0.0, 128
      %951 = vxpose.xlu0.b32.cont [6/16] 0.0, 128
      %952 = vxpose.xlu0.b32.cont [7/16] 0.0, 128
      %953 = vxpose.xlu0.b32.cont [8/16] 0.0, 128
      %954 = vxpose.xlu0.b32.cont [9/16] 0.0, 128
      %955 = vxpose.xlu0.b32.cont [10/16] 0.0, 128
      %956 = vxpose.xlu0.b32.cont [11/16] 0.0, 128
      %957 = vxpose.xlu0.b32.cont [12/16] 0.0, 128
      %958 = vxpose.xlu0.b32.cont [13/16] 0.0, 128
      %959 = vxpose.xlu0.b32.cont [14/16] 0.0, 128
      %960 = vxpose.xlu0.b32.cont [15/16] 0.0, 128
      %961 = vxpose.xlu0.b32.end [16/16] 0.0, 128
      %v962 = vpop.trf.xlu0
      %v963 = vpop.trf.xlu0
      %v964 = vpop.trf.xlu0
      %v965 = vpop.trf.xlu0
      %v966 = vpop.trf.xlu0
      %v967 = vpop.trf.xlu0
      %v968 = vpop.trf.xlu0
      %v969 = vpop.trf.xlu0
      %v970 = vpop.trf.xlu0
      %v971 = vpop.trf.xlu0
      %v972 = vpop.trf.xlu0
      %v973 = vpop.trf.xlu0
      %v974 = vpop.trf.xlu0
      %v975 = vpop.trf.xlu0
      %v976 = vpop.trf.xlu0
      %v977 = vpop.trf.xlu0
      %v979 = vsel %vm367, %v738, 0
      %v982 = vsel %vm367, %v739, 0
      %v985 = vsel %vm367, %v770, 0
      %v988 = vsel %vm367, %v771, 0
      %v991 = vsel %vm367, %v802, 0
      %v994 = vsel %vm367, %v803, 0
      %v997 = vsel %vm367, %v834, 0
      %v1000 = vsel %vm367, %v835, 0
      %v1003 = vsel %vm367, %v866, 0
      %v1006 = vsel %vm367, %v867, 0
      %v1009 = vsel %vm367, %v898, 0
      %v1012 = vsel %vm367, %v899, 0
      %v1015 = vsel %vm367, %v930, 0
      %v1018 = vsel %vm367, %v931, 0
      %v1021 = vsel %vm367, %v962, 0
      %v1024 = vsel %vm367, %v963, 0
      %1026 = vmatprep.subr.mxu0 0.0
      %1027 = vmatpush1.msra.mxu0 %v346
      %1028 = vmatprep.subr.mxu0 0.0
      %1029 = vmatpush1.msra.mxu0 %v347
      %1030 = vmatprep.subr.mxu0 0.0
      %1031 = vmatpush1.msra.mxu0 0.0
      %1032 = vmatprep.subr.mxu0 0.0
      %1033 = vmatpush1.msra.mxu0 0.0
      %1034 = vmatprep.subr.mxu0 0.0
      %1035 = vmatpush1.msra.mxu0 0.0
      %1036 = vmatprep.subr.mxu0 0.0
      %1037 = vmatpush1.msra.mxu0 0.0
      %1038 = vmatprep.subr.mxu0 0.0
      %1039 = vmatpush1.msra.mxu0 0.0
      %1040 = vmatprep.subr.mxu0 0.0
      %1041 = vmatpush1.msra.mxu0 0.0
      %1042 = vmatprep.subr.mxu0 0.0
      %1043 = vmatpush1.msra.mxu0 0.0
      %1044 = vmatprep.subr.mxu0 0.0
      %1045 = vmatpush1.msra.mxu0 0.0
      %1046 = vmatprep.subr.mxu0 0.0
      %1047 = vmatpush1.msra.mxu0 0.0
      %1048 = vmatprep.subr.mxu0 0.0
      %1049 = vmatpush1.msra.mxu0 0.0
      %1050 = vmatprep.subr.mxu0 0.0
      %1051 = vmatpush1.msra.mxu0 0.0
      %1052 = vmatprep.subr.mxu0 0.0
      %1053 = vmatpush1.msra.mxu0 0.0
      %1054 = vmatprep.subr.mxu0 0.0
      %1055 = vmatpush1.msra.mxu0 0.0
      %1056 = vmatprep.subr.mxu0 0.0
      %1057 = vmatpush1.msra.mxu0 0.0
      %1058 = vmatprep.subr.mxu0 0.0
      %1059 = vmatpush1.msra.mxu0 0.0
      %1060 = vmatprep.subr.mxu0 0.0
      %1061 = vmatpush1.msra.mxu0 0.0
      %1062 = vmatprep.subr.mxu0 0.0
      %1063 = vmatpush1.msra.mxu0 0.0
      %1064 = vmatprep.subr.mxu0 0.0
      %1065 = vmatpush1.msra.mxu0 0.0
      %1066 = vmatprep.subr.mxu0 0.0
      %1067 = vmatpush1.msra.mxu0 0.0
      %1068 = vmatprep.subr.mxu0 0.0
      %1069 = vmatpush1.msra.mxu0 0.0
      %1070 = vmatprep.subr.mxu0 0.0
      %1071 = vmatpush1.msra.mxu0 0.0
      %1072 = vmatprep.subr.mxu0 0.0
      %1073 = vmatpush1.msra.mxu0 0.0
      %1074 = vmatprep.subr.mxu0 0.0
      %1075 = vmatpush1.msra.mxu0 0.0
      %1076 = vmatprep.subr.mxu0 0.0
      %1077 = vmatpush1.msra.mxu0 0.0
      %1078 = vmatprep.subr.mxu0 0.0
      %1079 = vmatpush1.msra.mxu0 0.0
      %1080 = vmatprep.subr.mxu0 0.0
      %1081 = vmatpush1.msra.mxu0 0.0
      %1082 = vmatprep.subr.mxu0 0.0
      %1083 = vmatpush1.msra.mxu0 0.0
      %1084 = vmatprep.subr.mxu0 0.0
      %1085 = vmatpush1.msra.mxu0 0.0
      %1086 = vmatprep.subr.mxu0 0.0
      %1087 = vmatpush1.msra.mxu0 0.0
      %1088 = vmatprep.subr.mxu0 0.0
      %1089 = vmatpush1.msra.mxu0 0.0
      %1090 = vmatprep.mubr.f32.mxu0 0.0
      %1091 = vmatmul.mubr.f32.gmra.mrb[0].mxu0 %v979
      %v1092 = vpop.f32.mrb[0].mxu0
      %v1093 = vadd.f32 0.0, %v1092
      %v1094 = vpop.f32.mrb[0].mxu0
      %1095 = vmatprep.mubr.f32.mxu0 0.0
      %1096 = vmatmul.mubr.f32.gmra.mrb[0].mxu0 %v982
      %v1097 = vpop.f32.mrb[0].mxu0
      %v1098 = vadd.f32 0.0, %v1097
      %v1099 = vpop.f32.mrb[0].mxu0
      %1100 = vmatprep.mubr.f32.mxu0 0.0
      %1101 = vmatmul.mubr.f32.gmra.mrb[0].mxu0 %v985
      %v1102 = vpop.f32.mrb[0].mxu0
      %v1103 = vadd.f32 0.0, %v1102
      %v1104 = vpop.f32.mrb[0].mxu0
      %1105 = vmatprep.mubr.f32.mxu0 0.0
      %1106 = vmatmul.mubr.f32.gmra.mrb[0].mxu0 %v988
      %v1107 = vpop.f32.mrb[0].mxu0
      %v1108 = vadd.f32 0.0, %v1107
      %v1109 = vpop.f32.mrb[0].mxu0
      %1110 = vmatprep.mubr.f32.mxu0 0.0
      %1111 = vmatmul.mubr.f32.gmra.mrb[0].mxu0 %v991
      %v1112 = vpop.f32.mrb[0].mxu0
      %v1113 = vadd.f32 0.0, %v1112
      %v1114 = vpop.f32.mrb[0].mxu0
      %1115 = vmatprep.mubr.f32.mxu0 0.0
      %1116 = vmatmul.mubr.f32.gmra.mrb[0].mxu0 %v994
      %v1117 = vpop.f32.mrb[0].mxu0
      %v1118 = vadd.f32 0.0, %v1117
      %v1119 = vpop.f32.mrb[0].mxu0
      %1120 = vmatprep.mubr.f32.mxu0 0.0
      %1121 = vmatmul.mubr.f32.gmra.mrb[0].mxu0 %v997
      %v1122 = vpop.f32.mrb[0].mxu0
      %v1123 = vadd.f32 0.0, %v1122
      %v1124 = vpop.f32.mrb[0].mxu0
      %1125 = vmatprep.mubr.f32.mxu0 0.0
      %1126 = vmatmul.mubr.f32.gmra.mrb[0].mxu0 %v1000
      %v1127 = vpop.f32.mrb[0].mxu0
      %v1128 = vadd.f32 0.0, %v1127
      %v1129 = vpop.f32.mrb[0].mxu0
      %1130 = vmatprep.mubr.f32.mxu0 0.0
      %1131 = vmatmul.mubr.f32.gmra.mrb[0].mxu0 %v1003
      %v1132 = vpop.f32.mrb[0].mxu0
      %v1133 = vadd.f32 0.0, %v1132
      %v1134 = vpop.f32.mrb[0].mxu0
      %1135 = vmatprep.mubr.f32.mxu0 0.0
      %1136 = vmatmul.mubr.f32.gmra.mrb[0].mxu0 %v1006
      %v1137 = vpop.f32.mrb[0].mxu0
      %v1138 = vadd.f32 0.0, %v1137
      %v1139 = vpop.f32.mrb[0].mxu0
      %1140 = vmatprep.mubr.f32.mxu0 0.0
      %1141 = vmatmul.mubr.f32.gmra.mrb[0].mxu0 %v1009
      %v1142 = vpop.f32.mrb[0].mxu0
      %v1143 = vadd.f32 0.0, %v1142
      %v1144 = vpop.f32.mrb[0].mxu0
      %1145 = vmatprep.mubr.f32.mxu0 0.0
      %1146 = vmatmul.mubr.f32.gmra.mrb[0].mxu0 %v1012
      %v1147 = vpop.f32.mrb[0].mxu0
      %v1148 = vadd.f32 0.0, %v1147
      %v1149 = vpop.f32.mrb[0].mxu0
      %1150 = vmatprep.mubr.f32.mxu0 0.0
      %1151 = vmatmul.mubr.f32.gmra.mrb[0].mxu0 %v1015
      %v1152 = vpop.f32.mrb[0].mxu0
      %v1153 = vadd.f32 0.0, %v1152
      %v1154 = vpop.f32.mrb[0].mxu0
      %1155 = vmatprep.mubr.f32.mxu0 0.0
      %1156 = vmatmul.mubr.f32.gmra.mrb[0].mxu0 %v1018
      %v1157 = vpop.f32.mrb[0].mxu0
      %v1158 = vadd.f32 0.0, %v1157
      %v1159 = vpop.f32.mrb[0].mxu0
      %1160 = vmatprep.mubr.f32.mxu0 0.0
      %1161 = vmatmul.mubr.f32.gmra.mrb[0].mxu0 %v1021
      %v1162 = vpop.f32.mrb[0].mxu0
      %v1163 = vadd.f32 0.0, %v1162
      %v1164 = vpop.f32.mrb[0].mxu0
      %1165 = vmatprep.mubr.f32.mxu0 0.0
      %1166 = vmatmul.mubr.f32.gmra.mrb[0].mxu0 %v1024
      %v1167 = vpop.f32.mrb[0].mxu0
      %v1168 = vadd.f32 0.0, %v1167
      %v1169 = vpop.f32.mrb[0].mxu0
      %1170 = vdwg.mxu0
      %1171 = vmatprep.subr.mxu0 0.0
      %1172 = vmatpush1.msra.mxu0 %v349
      %1173 = vmatprep.subr.mxu0 0.0
      %1174 = vmatpush1.msra.mxu0 %v350
      %1175 = vmatprep.subr.mxu0 0.0
      %1176 = vmatpush1.msra.mxu0 0.0
      %1177 = vmatprep.subr.mxu0 0.0
      %1178 = vmatpush1.msra.mxu0 0.0
      %1179 = vmatprep.subr.mxu0 0.0
      %1180 = vmatpush1.msra.mxu0 0.0
      %1181 = vmatprep.subr.mxu0 0.0
      %1182 = vmatpush1.msra.mxu0 0.0
      %1183 = vmatprep.subr.mxu0 0.0
      %1184 = vmatpush1.msra.mxu0 0.0
      %1185 = vmatprep.subr.mxu0 0.0
      %1186 = vmatpush1.msra.mxu0 0.0
      %1187 = vmatprep.subr.mxu0 0.0
      %1188 = vmatpush1.msra.mxu0 0.0
      %1189 = vmatprep.subr.mxu0 0.0
      %1190 = vmatpush1.msra.mxu0 0.0
      %1191 = vmatprep.subr.mxu0 0.0
      %1192 = vmatpush1.msra.mxu0 0.0
      %1193 = vmatprep.subr.mxu0 0.0
      %1194 = vmatpush1.msra.mxu0 0.0
      %1195 = vmatprep.subr.mxu0 0.0
      %1196 = vmatpush1.msra.mxu0 0.0
      %1197 = vmatprep.subr.mxu0 0.0
      %1198 = vmatpush1.msra.mxu0 0.0
      %1199 = vmatprep.subr.mxu0 0.0
      %1200 = vmatpush1.msra.mxu0 0.0
      %1201 = vmatprep.subr.mxu0 0.0
      %1202 = vmatpush1.msra.mxu0 0.0
      %1203 = vmatprep.subr.mxu0 0.0
      %1204 = vmatpush1.msra.mxu0 0.0
      %1205 = vmatprep.subr.mxu0 0.0
      %1206 = vmatpush1.msra.mxu0 0.0
      %1207 = vmatprep.subr.mxu0 0.0
      %1208 = vmatpush1.msra.mxu0 0.0
      %1209 = vmatprep.subr.mxu0 0.0
      %1210 = vmatpush1.msra.mxu0 0.0
      %1211 = vmatprep.subr.mxu0 0.0
      %1212 = vmatpush1.msra.mxu0 0.0
      %1213 = vmatprep.subr.mxu0 0.0
      %1214 = vmatpush1.msra.mxu0 0.0
      %1215 = vmatprep.subr.mxu0 0.0
      %1216 = vmatpush1.msra.mxu0 0.0
      %1217 = vmatprep.subr.mxu0 0.0
      %1218 = vmatpush1.msra.mxu0 0.0
      %1219 = vmatprep.subr.mxu0 0.0
      %1220 = vmatpush1.msra.mxu0 0.0
      %1221 = vmatprep.subr.mxu0 0.0
      %1222 = vmatpush1.msra.mxu0 0.0
      %1223 = vmatprep.subr.mxu0 0.0
      %1224 = vmatpush1.msra.mxu0 0.0
      %1225 = vmatprep.subr.mxu0 0.0
      %1226 = vmatpush1.msra.mxu0 0.0
      %1227 = vmatprep.subr.mxu0 0.0
      %1228 = vmatpush1.msra.mxu0 0.0
      %1229 = vmatprep.subr.mxu0 0.0
      %1230 = vmatpush1.msra.mxu0 0.0
      %1231 = vmatprep.subr.mxu0 0.0
      %1232 = vmatpush1.msra.mxu0 0.0
      %1233 = vmatprep.subr.mxu0 0.0
      %1234 = vmatpush1.msra.mxu0 0.0
      %1235 = vmatprep.mubr.f32.mxu0 0.0
      %1236 = vmatmul.mubr.f32.gmra.mrb[0].mxu0 %v979
      %v1237 = vpop.f32.mrb[0].mxu0
      %v1238 = vadd.f32 0.0, %v1237
      %v1239 = vpop.f32.mrb[0].mxu0
      %1240 = vmatprep.mubr.f32.mxu0 0.0
      %1241 = vmatmul.mubr.f32.gmra.mrb[0].mxu0 %v982
      %v1242 = vpop.f32.mrb[0].mxu0
      %v1243 = vadd.f32 0.0, %v1242
      %v1244 = vpop.f32.mrb[0].mxu0
      %1245 = vmatprep.mubr.f32.mxu0 0.0
      %1246 = vmatmul.mubr.f32.gmra.mrb[0].mxu0 %v985
      %v1247 = vpop.f32.mrb[0].mxu0
      %v1248 = vadd.f32 0.0, %v1247
      %v1249 = vpop.f32.mrb[0].mxu0
      %1250 = vmatprep.mubr.f32.mxu0 0.0
      %1251 = vmatmul.mubr.f32.gmra.mrb[0].mxu0 %v988
      %v1252 = vpop.f32.mrb[0].mxu0
      %v1253 = vadd.f32 0.0, %v1252
      %v1254 = vpop.f32.mrb[0].mxu0
      %1255 = vmatprep.mubr.f32.mxu0 0.0
      %1256 = vmatmul.mubr.f32.gmra.mrb[0].mxu0 %v991
      %v1257 = vpop.f32.mrb[0].mxu0
      %v1258 = vadd.f32 0.0, %v1257
      %v1259 = vpop.f32.mrb[0].mxu0
      %1260 = vmatprep.mubr.f32.mxu0 0.0
      %1261 = vmatmul.mubr.f32.gmra.mrb[0].mxu0 %v994
      %v1262 = vpop.f32.mrb[0].mxu0
      %v1263 = vadd.f32 0.0, %v1262
      %v1264 = vpop.f32.mrb[0].mxu0
      %1265 = vmatprep.mubr.f32.mxu0 0.0
      %1266 = vmatmul.mubr.f32.gmra.mrb[0].mxu0 %v997
      %v1267 = vpop.f32.mrb[0].mxu0
      %v1268 = vadd.f32 0.0, %v1267
      %v1269 = vpop.f32.mrb[0].mxu0
      %1270 = vmatprep.mubr.f32.mxu0 0.0
      %1271 = vmatmul.mubr.f32.gmra.mrb[0].mxu0 %v1000
      %v1272 = vpop.f32.mrb[0].mxu0
      %v1273 = vadd.f32 0.0, %v1272
      %v1274 = vpop.f32.mrb[0].mxu0
      %1275 = vmatprep.mubr.f32.mxu0 0.0
      %1276 = vmatmul.mubr.f32.gmra.mrb[0].mxu0 %v1003
      %v1277 = vpop.f32.mrb[0].mxu0
      %v1278 = vadd.f32 0.0, %v1277
      %v1279 = vpop.f32.mrb[0].mxu0
      %1280 = vmatprep.mubr.f32.mxu0 0.0
      %1281 = vmatmul.mubr.f32.gmra.mrb[0].mxu0 %v1006
      %v1282 = vpop.f32.mrb[0].mxu0
      %v1283 = vadd.f32 0.0, %v1282
      %v1284 = vpop.f32.mrb[0].mxu0
      %1285 = vmatprep.mubr.f32.mxu0 0.0
      %1286 = vmatmul.mubr.f32.gmra.mrb[0].mxu0 %v1009
      %v1287 = vpop.f32.mrb[0].mxu0
      %v1288 = vadd.f32 0.0, %v1287
      %v1289 = vpop.f32.mrb[0].mxu0
      %1290 = vmatprep.mubr.f32.mxu0 0.0
      %1291 = vmatmul.mubr.f32.gmra.mrb[0].mxu0 %v1012
      %v1292 = vpop.f32.mrb[0].mxu0
      %v1293 = vadd.f32 0.0, %v1292
      %v1294 = vpop.f32.mrb[0].mxu0
      %1295 = vmatprep.mubr.f32.mxu0 0.0
      %1296 = vmatmul.mubr.f32.gmra.mrb[0].mxu0 %v1015
      %v1297 = vpop.f32.mrb[0].mxu0
      %v1298 = vadd.f32 0.0, %v1297
      %v1299 = vpop.f32.mrb[0].mxu0
      %1300 = vmatprep.mubr.f32.mxu0 0.0
      %1301 = vmatmul.mubr.f32.gmra.mrb[0].mxu0 %v1018
      %v1302 = vpop.f32.mrb[0].mxu0
      %v1303 = vadd.f32 0.0, %v1302
      %v1304 = vpop.f32.mrb[0].mxu0
      %1305 = vmatprep.mubr.f32.mxu0 0.0
      %1306 = vmatmul.mubr.f32.gmra.mrb[0].mxu0 %v1021
      %v1307 = vpop.f32.mrb[0].mxu0
      %v1308 = vadd.f32 0.0, %v1307
      %v1309 = vpop.f32.mrb[0].mxu0
      %1310 = vmatprep.mubr.f32.mxu0 0.0
      %1311 = vmatmul.mubr.f32.gmra.mrb[0].mxu0 %v1024
      %v1312 = vpop.f32.mrb[0].mxu0
      %v1313 = vadd.f32 0.0, %v1312
      %v1314 = vpop.f32.mrb[0].mxu0
      %1315 = vdwg.mxu0
      %v1316 = vsub.f32 %v1093, %v1278
      %v1317 = vsub.f32 %v1098, %v1283
      %v1318 = vsub.f32 %v1103, %v1288
      %v1319 = vsub.f32 %v1108, %v1293
      %v1320 = vsub.f32 %v1113, %v1298
      %v1321 = vsub.f32 %v1118, %v1303
      %v1322 = vsub.f32 %v1123, %v1308
      %v1323 = vsub.f32 %v1128, %v1313
      %v1324 = vadd.f32 %v1238, %v1133
      %v1325 = vadd.f32 %v1243, %v1138
      %v1326 = vadd.f32 %v1248, %v1143
      %v1327 = vadd.f32 %v1253, %v1148
      %v1328 = vadd.f32 %v1258, %v1153
      %v1329 = vadd.f32 %v1263, %v1158
      %v1330 = vadd.f32 %v1268, %v1163
      %v1331 = vadd.f32 %v1273, %v1168
      %v1332 = vld [vmem:[%s3] sm:$0x1f]
      %v1333 = vsel %vm367, %v1316, 0.0
      %1334 = vadd.xlane.f32.xlu0 %v1333
      %v1335 = vpop.xlane.xlu0 %1334
      %v1336 = vsel %vm367, %v1317, 0.0
      %1337 = vadd.xlane.f32.xlu0 %v1336
      %v1338 = vpop.xlane.xlu0 %1337
      %v1339 = vsel %vm367, %v1318, 0.0
      %1340 = vadd.xlane.f32.xlu0 %v1339
      %v1341 = vpop.xlane.xlu0 %1340
      %v1342 = vsel %vm367, %v1319, 0.0
      %1343 = vadd.xlane.f32.xlu0 %v1342
      %v1344 = vpop.xlane.xlu0 %1343
      %v1345 = vsel %vm367, %v1320, 0.0
      %1346 = vadd.xlane.f32.xlu0 %v1345
      %v1347 = vpop.xlane.xlu0 %1346
      %v1348 = vsel %vm367, %v1321, 0.0
      %1349 = vadd.xlane.f32.xlu0 %v1348
      %v1350 = vpop.xlane.xlu0 %1349
      %v1351 = vsel %vm367, %v1322, 0.0
      %1352 = vadd.xlane.f32.xlu0 %v1351
      %v1353 = vpop.xlane.xlu0 %1352
      %v1354 = vsel %vm367, %v1323, 0.0
      %1355 = vadd.xlane.f32.xlu0 %v1354
      %v1356 = vpop.xlane.xlu0 %1355
      %v1357 = vsel %vm367, %v1324, 0.0
      %1358 = vadd.xlane.f32.xlu0 %v1357
      %v1359 = vpop.xlane.xlu0 %1358
      %v1360 = vsel %vm367, %v1325, 0.0
      %1361 = vadd.xlane.f32.xlu0 %v1360
      %v1362 = vpop.xlane.xlu0 %1361
      %v1363 = vsel %vm367, %v1326, 0.0
      %1364 = vadd.xlane.f32.xlu0 %v1363
      %v1365 = vpop.xlane.xlu0 %1364
      %v1366 = vsel %vm367, %v1327, 0.0
      %1367 = vadd.xlane.f32.xlu0 %v1366
      %v1368 = vpop.xlane.xlu0 %1367
      %v1369 = vsel %vm367, %v1328, 0.0
      %1370 = vadd.xlane.f32.xlu0 %v1369
      %v1371 = vpop.xlane.xlu0 %1370
      %v1372 = vsel %vm367, %v1329, 0.0
      %1373 = vadd.xlane.f32.xlu0 %v1372
      %v1374 = vpop.xlane.xlu0 %1373
      %v1375 = vsel %vm367, %v1330, 0.0
      %1376 = vadd.xlane.f32.xlu0 %v1375
      %v1377 = vpop.xlane.xlu0 %1376
      %v1378 = vsel %vm367, %v1331, 0.0
      %1379 = vadd.xlane.f32.xlu0 %v1378
      %v1380 = vpop.xlane.xlu0 %1379
      %v1381 = vrcp.pop 16.0
      %v1382 = vmul.f32 %v1335, %v1381
      %v1383 = vmul.f32 %v1338, %v1381
      %v1384 = vmul.f32 %v1341, %v1381
      %v1385 = vmul.f32 %v1344, %v1381
      %v1386 = vmul.f32 %v1347, %v1381
      %v1387 = vmul.f32 %v1350, %v1381
      %v1388 = vmul.f32 %v1353, %v1381
      %v1389 = vmul.f32 %v1356, %v1381
      %v1390 = vmul.f32 %v1359, %v1381
      %v1391 = vmul.f32 %v1362, %v1381
      %v1392 = vmul.f32 %v1365, %v1381
      %v1393 = vmul.f32 %v1368, %v1381
      %v1394 = vmul.f32 %v1371, %v1381
      %v1395 = vmul.f32 %v1374, %v1381
      %v1396 = vmul.f32 %v1377, %v1381
      %v1397 = vmul.f32 %v1380, %v1381
      %v1398 = vsub.f32 %v1316, %v1382
      %v1399 = vsub.f32 %v1317, %v1383
      %v1400 = vsub.f32 %v1318, %v1384
      %v1401 = vsub.f32 %v1319, %v1385
      %v1402 = vsub.f32 %v1320, %v1386
      %v1403 = vsub.f32 %v1321, %v1387
      %v1404 = vsub.f32 %v1322, %v1388
      %v1405 = vsub.f32 %v1323, %v1389
      %v1406 = vsub.f32 %v1324, %v1390
      %v1407 = vsub.f32 %v1325, %v1391
      %v1408 = vsub.f32 %v1326, %v1392
      %v1409 = vsub.f32 %v1327, %v1393
      %v1410 = vsub.f32 %v1328, %v1394
      %v1411 = vsub.f32 %v1329, %v1395
      %v1412 = vsub.f32 %v1330, %v1396
      %v1413 = vsub.f32 %v1331, %v1397
      %v1414 = vmul.f32 %v1398, %v1398
      %v1415 = vmul.f32 %v1399, %v1399
      %v1416 = vmul.f32 %v1400, %v1400
      %v1417 = vmul.f32 %v1401, %v1401
      %v1418 = vmul.f32 %v1402, %v1402
      %v1419 = vmul.f32 %v1403, %v1403
      %v1420 = vmul.f32 %v1404, %v1404
      %v1421 = vmul.f32 %v1405, %v1405
      %v1422 = vmul.f32 %v1406, %v1406
      %v1423 = vmul.f32 %v1407, %v1407
      %v1424 = vmul.f32 %v1408, %v1408
      %v1425 = vmul.f32 %v1409, %v1409
      %v1426 = vmul.f32 %v1410, %v1410
      %v1427 = vmul.f32 %v1411, %v1411
      %v1428 = vmul.f32 %v1412, %v1412
      %v1429 = vmul.f32 %v1413, %v1413
      %v1430 = vsel %vm367, %v1414, 0.0
      %1431 = vadd.xlane.f32.xlu0 %v1430
      %v1432 = vpop.xlane.xlu0 %1431
      %v1433 = vsel %vm367, %v1415, 0.0
      %1434 = vadd.xlane.f32.xlu0 %v1433
      %v1435 = vpop.xlane.xlu0 %1434
      %v1436 = vsel %vm367, %v1416, 0.0
      %1437 = vadd.xlane.f32.xlu0 %v1436
      %v1438 = vpop.xlane.xlu0 %1437
      %v1439 = vsel %vm367, %v1417, 0.0
      %1440 = vadd.xlane.f32.xlu0 %v1439
      %v1441 = vpop.xlane.xlu0 %1440
      %v1442 = vsel %vm367, %v1418, 0.0
      %1443 = vadd.xlane.f32.xlu0 %v1442
      %v1444 = vpop.xlane.xlu0 %1443
      %v1445 = vsel %vm367, %v1419, 0.0
      %1446 = vadd.xlane.f32.xlu0 %v1445
      %v1447 = vpop.xlane.xlu0 %1446
      %v1448 = vsel %vm367, %v1420, 0.0
      %1449 = vadd.xlane.f32.xlu0 %v1448
      %v1450 = vpop.xlane.xlu0 %1449
      %v1451 = vsel %vm367, %v1421, 0.0
      %1452 = vadd.xlane.f32.xlu0 %v1451
      %v1453 = vpop.xlane.xlu0 %1452
      %v1454 = vsel %vm367, %v1422, 0.0
      %1455 = vadd.xlane.f32.xlu0 %v1454
      %v1456 = vpop.xlane.xlu0 %1455
      %v1457 = vsel %vm367, %v1423, 0.0
      %1458 = vadd.xlane.f32.xlu0 %v1457
      %v1459 = vpop.xlane.xlu0 %1458
      %v1460 = vsel %vm367, %v1424, 0.0
      %1461 = vadd.xlane.f32.xlu0 %v1460
      %v1462 = vpop.xlane.xlu0 %1461
      %v1463 = vsel %vm367, %v1425, 0.0
      %1464 = vadd.xlane.f32.xlu0 %v1463
      %v1465 = vpop.xlane.xlu0 %1464
      %v1466 = vsel %vm367, %v1426, 0.0
      %1467 = vadd.xlane.f32.xlu0 %v1466
      %v1468 = vpop.xlane.xlu0 %1467
      %v1469 = vsel %vm367, %v1427, 0.0
      %1470 = vadd.xlane.f32.xlu0 %v1469
      %v1471 = vpop.xlane.xlu0 %1470
      %v1472 = vsel %vm367, %v1428, 0.0
      %1473 = vadd.xlane.f32.xlu0 %v1472
      %v1474 = vpop.xlane.xlu0 %1473
      %v1475 = vsel %vm367, %v1429, 0.0
      %1476 = vadd.xlane.f32.xlu0 %v1475
      %v1477 = vpop.xlane.xlu0 %1476
      %v1478 = vmul.f32 %v1432, %v1381
      %v1479 = vmul.f32 %v1435, %v1381
      %v1480 = vmul.f32 %v1438, %v1381
      %v1481 = vmul.f32 %v1441, %v1381
      %v1482 = vmul.f32 %v1444, %v1381
      %v1483 = vmul.f32 %v1447, %v1381
      %v1484 = vmul.f32 %v1450, %v1381
      %v1485 = vmul.f32 %v1453, %v1381
      %v1486 = vmul.f32 %v1456, %v1381
      %v1487 = vmul.f32 %v1459, %v1381
      %v1488 = vmul.f32 %v1462, %v1381
      %v1489 = vmul.f32 %v1465, %v1381
      %v1490 = vmul.f32 %v1468, %v1381
      %v1491 = vmul.f32 %v1471, %v1381
      %v1492 = vmul.f32 %v1474, %v1381
      %v1493 = vmul.f32 %v1477, %v1381
      %v1494 = vadd.f32 %v1478, 1e-05
      %v1495 = vadd.f32 %v1479, 1e-05
      %v1496 = vadd.f32 %v1480, 1e-05
      %v1497 = vadd.f32 %v1481, 1e-05
      %v1498 = vadd.f32 %v1482, 1e-05
      %v1499 = vadd.f32 %v1483, 1e-05
      %v1500 = vadd.f32 %v1484, 1e-05
      %v1501 = vadd.f32 %v1485, 1e-05
      %v1502 = vadd.f32 %v1486, 1e-05
      %v1503 = vadd.f32 %v1487, 1e-05
      %v1504 = vadd.f32 %v1488, 1e-05
      %v1505 = vadd.f32 %v1489, 1e-05
      %v1506 = vadd.f32 %v1490, 1e-05
      %v1507 = vadd.f32 %v1491, 1e-05
      %v1508 = vadd.f32 %v1492, 1e-05
      %v1509 = vadd.f32 %v1493, 1e-05
      %v1510 = vrsqrt.pop %v1494
      %v1511 = vrsqrt.pop %v1495
      %v1512 = vrsqrt.pop %v1496
      %v1513 = vrsqrt.pop %v1497
      %v1514 = vrsqrt.pop %v1498
      %v1515 = vrsqrt.pop %v1499
      %v1516 = vrsqrt.pop %v1500
      %v1517 = vrsqrt.pop %v1501
      %v1518 = vrsqrt.pop %v1502
      %v1519 = vrsqrt.pop %v1503
      %v1520 = vrsqrt.pop %v1504
      %v1521 = vrsqrt.pop %v1505
      %v1522 = vrsqrt.pop %v1506
      %v1523 = vrsqrt.pop %v1507
      %v1524 = vrsqrt.pop %v1508
      %v1525 = vrsqrt.pop %v1509
      %v1526 = vmul.f32 %v1398, %v1510
      %v1527 = vmul.f32 %v1399, %v1511
      %v1528 = vmul.f32 %v1400, %v1512
      %v1529 = vmul.f32 %v1401, %v1513
      %v1530 = vmul.f32 %v1402, %v1514
      %v1531 = vmul.f32 %v1403, %v1515
      %v1532 = vmul.f32 %v1404, %v1516
      %v1533 = vmul.f32 %v1405, %v1517
      %v1534 = vmul.f32 %v1406, %v1518
      %v1535 = vmul.f32 %v1407, %v1519
      %v1536 = vmul.f32 %v1408, %v1520
      %v1537 = vmul.f32 %v1409, %v1521
      %v1538 = vmul.f32 %v1410, %v1522
      %v1539 = vmul.f32 %v1411, %v1523
      %v1540 = vmul.f32 %v1412, %v1524
      %v1541 = vmul.f32 %v1413, %v1525
      %v1542 = vlaneseq
      %v1543 = vshrl.u32 %v1542, 7
      %v1544 = vsub.s32 0, %v1543
      %v1545 = vrot.slane %v1332, %v1544
      %v1546 = vmul.f32 %v1526, %v1545
      %v1547 = vmul.f32 %v1527, %v1545
      %v1548 = vmul.f32 %v1528, %v1545
      %v1549 = vmul.f32 %v1529, %v1545
      %v1550 = vmul.f32 %v1530, %v1545
      %v1551 = vmul.f32 %v1531, %v1545
      %v1552 = vmul.f32 %v1532, %v1545
      %v1553 = vmul.f32 %v1533, %v1545
      %v1554 = vmul.f32 %v1534, %v1545
      %v1555 = vmul.f32 %v1535, %v1545
      %v1556 = vmul.f32 %v1536, %v1545
      %v1557 = vmul.f32 %v1537, %v1545
      %v1558 = vmul.f32 %v1538, %v1545
      %v1559 = vmul.f32 %v1539, %v1545
      %v1560 = vmul.f32 %v1540, %v1545
      %v1561 = vmul.f32 %v1541, %v1545
      %v1562 = vlaneseq
      %v1563 = vshrl.u32 %v1562, 7
      %v1564 = vsub.s32 1, %v1563
      %v1565 = vrot.slane %v1332, %v1564
      %v1566 = vadd.f32 %v1546, %v1565
      %v1567 = vadd.f32 %v1547, %v1565
      %v1568 = vadd.f32 %v1548, %v1565
      %v1569 = vadd.f32 %v1549, %v1565
      %v1570 = vadd.f32 %v1550, %v1565
      %v1571 = vadd.f32 %v1551, %v1565
      %v1572 = vadd.f32 %v1552, %v1565
      %v1573 = vadd.f32 %v1553, %v1565
      %v1574 = vadd.f32 %v1554, %v1565
      %v1575 = vadd.f32 %v1555, %v1565
      %v1576 = vadd.f32 %v1556, %v1565
      %v1577 = vadd.f32 %v1557, %v1565
      %v1578 = vadd.f32 %v1558, %v1565
      %v1579 = vadd.f32 %v1559, %v1565
      %v1580 = vadd.f32 %v1560, %v1565
      %v1581 = vadd.f32 %v1561, %v1565
      %v1582 = vsel %vm367, %v1566, 0.0
      %1583 = vadd.xlane.f32.xlu0 %v1582
      %v1584 = vpop.xlane.xlu0 %1583
      %v1585 = vsel %vm367, %v1567, 0.0
      %1586 = vadd.xlane.f32.xlu0 %v1585
      %v1587 = vpop.xlane.xlu0 %1586
      %v1588 = vsel %vm367, %v1568, 0.0
      %1589 = vadd.xlane.f32.xlu0 %v1588
      %v1590 = vpop.xlane.xlu0 %1589
      %v1591 = vsel %vm367, %v1569, 0.0
      %1592 = vadd.xlane.f32.xlu0 %v1591
      %v1593 = vpop.xlane.xlu0 %1592
      %v1594 = vsel %vm367, %v1570, 0.0
      %1595 = vadd.xlane.f32.xlu0 %v1594
      %v1596 = vpop.xlane.xlu0 %1595
      %v1597 = vsel %vm367, %v1571, 0.0
      %1598 = vadd.xlane.f32.xlu0 %v1597
      %v1599 = vpop.xlane.xlu0 %1598
      %v1600 = vsel %vm367, %v1572, 0.0
      %1601 = vadd.xlane.f32.xlu0 %v1600
      %v1602 = vpop.xlane.xlu0 %1601
      %v1603 = vsel %vm367, %v1573, 0.0
      %1604 = vadd.xlane.f32.xlu0 %v1603
      %v1605 = vpop.xlane.xlu0 %1604
      %v1606 = vsel %vm367, %v1574, 0.0
      %1607 = vadd.xlane.f32.xlu0 %v1606
      %v1608 = vpop.xlane.xlu0 %1607
      %v1609 = vsel %vm367, %v1575, 0.0
      %1610 = vadd.xlane.f32.xlu0 %v1609
      %v1611 = vpop.xlane.xlu0 %1610
      %v1612 = vsel %vm367, %v1576, 0.0
      %1613 = vadd.xlane.f32.xlu0 %v1612
      %v1614 = vpop.xlane.xlu0 %1613
      %v1615 = vsel %vm367, %v1577, 0.0
      %1616 = vadd.xlane.f32.xlu0 %v1615
      %v1617 = vpop.xlane.xlu0 %1616
      %v1618 = vsel %vm367, %v1578, 0.0
      %1619 = vadd.xlane.f32.xlu0 %v1618
      %v1620 = vpop.xlane.xlu0 %1619
      %v1621 = vsel %vm367, %v1579, 0.0
      %1622 = vadd.xlane.f32.xlu0 %v1621
      %v1623 = vpop.xlane.xlu0 %1622
      %v1624 = vsel %vm367, %v1580, 0.0
      %1625 = vadd.xlane.f32.xlu0 %v1624
      %v1626 = vpop.xlane.xlu0 %1625
      %v1627 = vsel %vm367, %v1581, 0.0
      %1628 = vadd.xlane.f32.xlu0 %v1627
      %v1629 = vpop.xlane.xlu0 %1628
      %v1630 = vmul.f32 %v1584, %v1381
      %v1631 = vmul.f32 %v1587, %v1381
      %v1632 = vmul.f32 %v1590, %v1381
      %v1633 = vmul.f32 %v1593, %v1381
      %v1634 = vmul.f32 %v1596, %v1381
      %v1635 = vmul.f32 %v1599, %v1381
      %v1636 = vmul.f32 %v1602, %v1381
      %v1637 = vmul.f32 %v1605, %v1381
      %v1638 = vmul.f32 %v1608, %v1381
      %v1639 = vmul.f32 %v1611, %v1381
      %v1640 = vmul.f32 %v1614, %v1381
      %v1641 = vmul.f32 %v1617, %v1381
      %v1642 = vmul.f32 %v1620, %v1381
      %v1643 = vmul.f32 %v1623, %v1381
      %v1644 = vmul.f32 %v1626, %v1381
      %v1645 = vmul.f32 %v1629, %v1381
      %v1646 = vsub.f32 %v1566, %v1630
      %v1647 = vsub.f32 %v1567, %v1631
      %v1648 = vsub.f32 %v1568, %v1632
      %v1649 = vsub.f32 %v1569, %v1633
      %v1650 = vsub.f32 %v1570, %v1634
      %v1651 = vsub.f32 %v1571, %v1635
      %v1652 = vsub.f32 %v1572, %v1636
      %v1653 = vsub.f32 %v1573, %v1637
      %v1654 = vsub.f32 %v1574, %v1638
      %v1655 = vsub.f32 %v1575, %v1639
      %v1656 = vsub.f32 %v1576, %v1640
      %v1657 = vsub.f32 %v1577, %v1641
      %v1658 = vsub.f32 %v1578, %v1642
      %v1659 = vsub.f32 %v1579, %v1643
      %v1660 = vsub.f32 %v1580, %v1644
      %v1661 = vsub.f32 %v1581, %v1645
      %v1662 = vmul.f32 %v1646, %v1646
      %v1663 = vmul.f32 %v1647, %v1647
      %v1664 = vmul.f32 %v1648, %v1648
      %v1665 = vmul.f32 %v1649, %v1649
      %v1666 = vmul.f32 %v1650, %v1650
      %v1667 = vmul.f32 %v1651, %v1651
      %v1668 = vmul.f32 %v1652, %v1652
      %v1669 = vmul.f32 %v1653, %v1653
      %v1670 = vmul.f32 %v1654, %v1654
      %v1671 = vmul.f32 %v1655, %v1655
      %v1672 = vmul.f32 %v1656, %v1656
      %v1673 = vmul.f32 %v1657, %v1657
      %v1674 = vmul.f32 %v1658, %v1658
      %v1675 = vmul.f32 %v1659, %v1659
      %v1676 = vmul.f32 %v1660, %v1660
      %v1677 = vmul.f32 %v1661, %v1661
      %v1678 = vsel %vm367, %v1662, 0.0
      %1679 = vadd.xlane.f32.xlu0 %v1678
      %v1680 = vpop.xlane.xlu0 %1679
      %v1681 = vsel %vm367, %v1663, 0.0
      %1682 = vadd.xlane.f32.xlu0 %v1681
      %v1683 = vpop.xlane.xlu0 %1682
      %v1684 = vsel %vm367, %v1664, 0.0
      %1685 = vadd.xlane.f32.xlu0 %v1684
      %v1686 = vpop.xlane.xlu0 %1685
      %v1687 = vsel %vm367, %v1665, 0.0
      %1688 = vadd.xlane.f32.xlu0 %v1687
      %v1689 = vpop.xlane.xlu0 %1688
      %v1690 = vsel %vm367, %v1666, 0.0
      %1691 = vadd.xlane.f32.xlu0 %v1690
      %v1692 = vpop.xlane.xlu0 %1691
      %v1693 = vsel %vm367, %v1667, 0.0
      %1694 = vadd.xlane.f32.xlu0 %v1693
      %v1695 = vpop.xlane.xlu0 %1694
      %v1696 = vsel %vm367, %v1668, 0.0
      %1697 = vadd.xlane.f32.xlu0 %v1696
      %v1698 = vpop.xlane.xlu0 %1697
      %v1699 = vsel %vm367, %v1669, 0.0
      %1700 = vadd.xlane.f32.xlu0 %v1699
      %v1701 = vpop.xlane.xlu0 %1700
      %v1702 = vsel %vm367, %v1670, 0.0
      %1703 = vadd.xlane.f32.xlu0 %v1702
      %v1704 = vpop.xlane.xlu0 %1703
      %v1705 = vsel %vm367, %v1671, 0.0
      %1706 = vadd.xlane.f32.xlu0 %v1705
      %v1707 = vpop.xlane.xlu0 %1706
      %v1708 = vsel %vm367, %v1672, 0.0
      %1709 = vadd.xlane.f32.xlu0 %v1708
      %v1710 = vpop.xlane.xlu0 %1709
      %v1711 = vsel %vm367, %v1673, 0.0
      %1712 = vadd.xlane.f32.xlu0 %v1711
      %v1713 = vpop.xlane.xlu0 %1712
      %v1714 = vsel %vm367, %v1674, 0.0
      %1715 = vadd.xlane.f32.xlu0 %v1714
      %v1716 = vpop.xlane.xlu0 %1715
      %v1717 = vsel %vm367, %v1675, 0.0
      %1718 = vadd.xlane.f32.xlu0 %v1717
      %v1719 = vpop.xlane.xlu0 %1718
      %v1720 = vsel %vm367, %v1676, 0.0
      %1721 = vadd.xlane.f32.xlu0 %v1720
      %v1722 = vpop.xlane.xlu0 %1721
      %v1723 = vsel %vm367, %v1677, 0.0
      %1724 = vadd.xlane.f32.xlu0 %v1723
      %v1725 = vpop.xlane.xlu0 %1724
      %v1726 = vmul.f32 %v1680, %v1381
      %v1727 = vmul.f32 %v1683, %v1381
      %v1728 = vmul.f32 %v1686, %v1381
      %v1729 = vmul.f32 %v1689, %v1381
      %v1730 = vmul.f32 %v1692, %v1381
      %v1731 = vmul.f32 %v1695, %v1381
      %v1732 = vmul.f32 %v1698, %v1381
      %v1733 = vmul.f32 %v1701, %v1381
      %v1734 = vmul.f32 %v1704, %v1381
      %v1735 = vmul.f32 %v1707, %v1381
      %v1736 = vmul.f32 %v1710, %v1381
      %v1737 = vmul.f32 %v1713, %v1381
      %v1738 = vmul.f32 %v1716, %v1381
      %v1739 = vmul.f32 %v1719, %v1381
      %v1740 = vmul.f32 %v1722, %v1381
      %v1741 = vmul.f32 %v1725, %v1381
      %v1742 = vadd.f32 %v1726, 1e-05
      %v1743 = vadd.f32 %v1727, 1e-05
      %v1744 = vadd.f32 %v1728, 1e-05
      %v1745 = vadd.f32 %v1729, 1e-05
      %v1746 = vadd.f32 %v1730, 1e-05
      %v1747 = vadd.f32 %v1731, 1e-05
      %v1748 = vadd.f32 %v1732, 1e-05
      %v1749 = vadd.f32 %v1733, 1e-05
      %v1750 = vadd.f32 %v1734, 1e-05
      %v1751 = vadd.f32 %v1735, 1e-05
      %v1752 = vadd.f32 %v1736, 1e-05
      %v1753 = vadd.f32 %v1737, 1e-05
      %v1754 = vadd.f32 %v1738, 1e-05
      %v1755 = vadd.f32 %v1739, 1e-05
      %v1756 = vadd.f32 %v1740, 1e-05
      %v1757 = vadd.f32 %v1741, 1e-05
      %v1758 = vrsqrt.pop %v1742
      %v1759 = vrsqrt.pop %v1743
      %v1760 = vrsqrt.pop %v1744
      %v1761 = vrsqrt.pop %v1745
      %v1762 = vrsqrt.pop %v1746
      %v1763 = vrsqrt.pop %v1747
      %v1764 = vrsqrt.pop %v1748
      %v1765 = vrsqrt.pop %v1749
      %v1766 = vrsqrt.pop %v1750
      %v1767 = vrsqrt.pop %v1751
      %v1768 = vrsqrt.pop %v1752
      %v1769 = vrsqrt.pop %v1753
      %v1770 = vrsqrt.pop %v1754
      %v1771 = vrsqrt.pop %v1755
      %v1772 = vrsqrt.pop %v1756
      %v1773 = vrsqrt.pop %v1757
      %v1774 = vmul.f32 %v1646, %v1758
      %v1775 = vmul.f32 %v1647, %v1759
      %v1776 = vmul.f32 %v1648, %v1760
      %v1777 = vmul.f32 %v1649, %v1761
      %v1778 = vmul.f32 %v1650, %v1762
      %v1779 = vmul.f32 %v1651, %v1763
      %v1780 = vmul.f32 %v1652, %v1764
      %v1781 = vmul.f32 %v1653, %v1765
      %v1782 = vmul.f32 %v1654, %v1766
      %v1783 = vmul.f32 %v1655, %v1767
      %v1784 = vmul.f32 %v1656, %v1768
      %v1785 = vmul.f32 %v1657, %v1769
      %v1786 = vmul.f32 %v1658, %v1770
      %v1787 = vmul.f32 %v1659, %v1771
      %v1788 = vmul.f32 %v1660, %v1772
      %v1789 = vmul.f32 %v1661, %v1773
      %v1790 = vlaneseq
      %v1791 = vshrl.u32 %v1790, 7
      %v1792 = vsub.s32 2, %v1791
      %v1793 = vrot.slane %v1332, %v1792
      %v1794 = vmul.f32 %v1774, %v1793
      %v1795 = vmul.f32 %v1775, %v1793
      %v1796 = vmul.f32 %v1776, %v1793
      %v1797 = vmul.f32 %v1777, %v1793
      %v1798 = vmul.f32 %v1778, %v1793
      %v1799 = vmul.f32 %v1779, %v1793
      %v1800 = vmul.f32 %v1780, %v1793
      %v1801 = vmul.f32 %v1781, %v1793
      %v1802 = vmul.f32 %v1782, %v1793
      %v1803 = vmul.f32 %v1783, %v1793
      %v1804 = vmul.f32 %v1784, %v1793
      %v1805 = vmul.f32 %v1785, %v1793
      %v1806 = vmul.f32 %v1786, %v1793
      %v1807 = vmul.f32 %v1787, %v1793
      %v1808 = vmul.f32 %v1788, %v1793
      %v1809 = vmul.f32 %v1789, %v1793
      %v1810 = vlaneseq
      %v1811 = vshrl.u32 %v1810, 7
      %v1812 = vsub.s32 3, %v1811
      %v1813 = vrot.slane %v1332, %v1812
      %v1814 = vadd.f32 %v1794, %v1813
      %v1815 = vadd.f32 %v1795, %v1813
      %v1816 = vadd.f32 %v1796, %v1813
      %v1817 = vadd.f32 %v1797, %v1813
      %v1818 = vadd.f32 %v1798, %v1813
      %v1819 = vadd.f32 %v1799, %v1813
      %v1820 = vadd.f32 %v1800, %v1813
      %v1821 = vadd.f32 %v1801, %v1813
      %v1822 = vadd.f32 %v1802, %v1813
      %v1823 = vadd.f32 %v1803, %v1813
      %v1824 = vadd.f32 %v1804, %v1813
      %v1825 = vadd.f32 %v1805, %v1813
      %v1826 = vadd.f32 %v1806, %v1813
      %v1827 = vadd.f32 %v1807, %v1813
      %v1828 = vadd.f32 %v1808, %v1813
      %v1829 = vadd.f32 %v1809, %v1813
      %v1830 = vpack.c.bf16 %v1815, %v1814
      %v1831 = vpack.c.bf16 %v1817, %v1816
      %v1832 = vpack.c.bf16 %v1819, %v1818
      %v1833 = vpack.c.bf16 %v1821, %v1820
      %v1834 = vpack.c.bf16 %v1823, %v1822
      %v1835 = vpack.c.bf16 %v1825, %v1824
      %v1836 = vpack.c.bf16 %v1827, %v1826
      %v1837 = vpack.c.bf16 %v1829, %v1828
      %v1838 = vld [vmem:[%s5] sm:$0xf]
      %v1839 = vld [vmem:[%s5 + $0x4] sm:$0xf]
      %v1840 = vld [vmem:[%s4] sm:$0x1]
      %v1842 = vlaneseq
      %v1843 = vshrl.u32 %v1842, 7
      %v1844 = vsub.s32 0, %v1843
      %v1845 = vrot.slane %v1840, %v1844
      %v1849 = vunpack.c.l.b16 %v1838
      %v1850 = vunpack.c.l.b16 %v1839
      %v1851 = vpack.c.b16 %v1850, %v1849
      %v1854 = vsel %vm367, %v1830, 0
      %v1857 = vsel %vm367, %v1831, 0
      %v1860 = vsel %vm367, %v1832, 0
      %v1863 = vsel %vm367, %v1833, 0
      %v1866 = vsel %vm367, %v1834, 0
      %v1869 = vsel %vm367, %v1835, 0
      %v1872 = vsel %vm367, %v1836, 0
      %v1875 = vsel %vm367, %v1837, 0
      %1877 = vmatprep.subr.bf16.mxu0 0
      %1878 = vmatpush1.bf16.msra.mxu0 %v1851
      %1879 = vmatprep.subr.bf16.mxu0 0
      %1880 = vmatpush1.bf16.msra.mxu0 0
      %1881 = vmatprep.subr.bf16.mxu0 0
      %1882 = vmatpush1.bf16.msra.mxu0 0
      %1883 = vmatprep.subr.bf16.mxu0 0
      %1884 = vmatpush1.bf16.msra.mxu0 0
      %1885 = vmatprep.subr.bf16.mxu0 0
      %1886 = vmatpush1.bf16.msra.mxu0 0
      %1887 = vmatprep.subr.bf16.mxu0 0
      %1888 = vmatpush1.bf16.msra.mxu0 0
      %1889 = vmatprep.subr.bf16.mxu0 0
      %1890 = vmatpush1.bf16.msra.mxu0 0
      %1891 = vmatprep.subr.bf16.mxu0 0
      %1892 = vmatpush1.bf16.msra.mxu0 0
      %1893 = vmatprep.subr.bf16.mxu0 0
      %1894 = vmatpush1.bf16.msra.mxu0 0
      %1895 = vmatprep.subr.bf16.mxu0 0
      %1896 = vmatpush1.bf16.msra.mxu0 0
      %1897 = vmatprep.subr.bf16.mxu0 0
      %1898 = vmatpush1.bf16.msra.mxu0 0
      %1899 = vmatprep.subr.bf16.mxu0 0
      %1900 = vmatpush1.bf16.msra.mxu0 0
      %1901 = vmatprep.subr.bf16.mxu0 0
      %1902 = vmatpush1.bf16.msra.mxu0 0
      %1903 = vmatprep.subr.bf16.mxu0 0
      %1904 = vmatpush1.bf16.msra.mxu0 0
      %1905 = vmatprep.subr.bf16.mxu0 0
      %1906 = vmatpush1.bf16.msra.mxu0 0
      %1907 = vmatprep.subr.bf16.mxu0 0
      %1908 = vmatpush1.bf16.msra.mxu0 0
      %1909 = vmatprep.mubr.bf16.mxu0 0
      %1910 = vmatmul.mubr.bf16.gmra.mrb[0].mxu0 %v1854
      %v1911 = vpop.f32.mrb[0].mxu0
      %v1912 = vadd.f32 %v1845, %v1911
      %v1913 = vpop.f32.mrb[0].mxu0
      %v1914 = vpop.f32.mrb[0].mxu0
      %v1915 = vadd.f32 %v1845, %v1914
      %v1916 = vpop.f32.mrb[0].mxu0
      %1917 = vmatprep.mubr.bf16.mxu0 0
      %1918 = vmatmul.mubr.bf16.gmra.mrb[0].mxu0 %v1857
      %v1919 = vpop.f32.mrb[0].mxu0
      %v1920 = vadd.f32 %v1845, %v1919
      %v1921 = vpop.f32.mrb[0].mxu0
      %v1922 = vpop.f32.mrb[0].mxu0
      %v1923 = vadd.f32 %v1845, %v1922
      %v1924 = vpop.f32.mrb[0].mxu0
      %1925 = vmatprep.mubr.bf16.mxu0 0
      %1926 = vmatmul.mubr.bf16.gmra.mrb[0].mxu0 %v1860
      %v1927 = vpop.f32.mrb[0].mxu0
      %v1928 = vadd.f32 %v1845, %v1927
      %v1929 = vpop.f32.mrb[0].mxu0
      %v1930 = vpop.f32.mrb[0].mxu0
      %v1931 = vadd.f32 %v1845, %v1930
      %v1932 = vpop.f32.mrb[0].mxu0
      %1933 = vmatprep.mubr.bf16.mxu0 0
      %1934 = vmatmul.mubr.bf16.gmra.mrb[0].mxu0 %v1863
      %v1935 = vpop.f32.mrb[0].mxu0
      %v1936 = vadd.f32 %v1845, %v1935
      %v1937 = vpop.f32.mrb[0].mxu0
      %v1938 = vpop.f32.mrb[0].mxu0
      %v1939 = vadd.f32 %v1845, %v1938
      %v1940 = vpop.f32.mrb[0].mxu0
      %1941 = vmatprep.mubr.bf16.mxu0 0
      %1942 = vmatmul.mubr.bf16.gmra.mrb[0].mxu0 %v1866
      %v1943 = vpop.f32.mrb[0].mxu0
      %v1944 = vadd.f32 %v1845, %v1943
      %v1945 = vpop.f32.mrb[0].mxu0
      %v1946 = vpop.f32.mrb[0].mxu0
      %v1947 = vadd.f32 %v1845, %v1946
      %v1948 = vpop.f32.mrb[0].mxu0
      %1949 = vmatprep.mubr.bf16.mxu0 0
      %1950 = vmatmul.mubr.bf16.gmra.mrb[0].mxu0 %v1869
      %v1951 = vpop.f32.mrb[0].mxu0
      %v1952 = vadd.f32 %v1845, %v1951
      %v1953 = vpop.f32.mrb[0].mxu0
      %v1954 = vpop.f32.mrb[0].mxu0
      %v1955 = vadd.f32 %v1845, %v1954
      %v1956 = vpop.f32.mrb[0].mxu0
      %1957 = vmatprep.mubr.bf16.mxu0 0
      %1958 = vmatmul.mubr.bf16.gmra.mrb[0].mxu0 %v1872
      %v1959 = vpop.f32.mrb[0].mxu0
      %v1960 = vadd.f32 %v1845, %v1959
      %v1961 = vpop.f32.mrb[0].mxu0
      %v1962 = vpop.f32.mrb[0].mxu0
      %v1963 = vadd.f32 %v1845, %v1962
      %v1964 = vpop.f32.mrb[0].mxu0
      %1965 = vmatprep.mubr.bf16.mxu0 0
      %1966 = vmatmul.mubr.bf16.gmra.mrb[0].mxu0 %v1875
      %v1967 = vpop.f32.mrb[0].mxu0
      %v1968 = vadd.f32 %v1845, %v1967
      %v1969 = vpop.f32.mrb[0].mxu0
      %v1970 = vpop.f32.mrb[0].mxu0
      %v1971 = vadd.f32 %v1845, %v1970
      %v1972 = vpop.f32.mrb[0].mxu0
      %1973 = vdwg.mxu0
      %v1974 = vmul.f32 %v1912, 0.5
      %v1975 = vmul.f32 %v1915, 0.5
      %v1976 = vmul.f32 %v1920, 0.5
      %v1977 = vmul.f32 %v1923, 0.5
      %v1978 = vmul.f32 %v1928, 0.5
      %v1979 = vmul.f32 %v1931, 0.5
      %v1980 = vmul.f32 %v1936, 0.5
      %v1981 = vmul.f32 %v1939, 0.5
      %v1982 = vmul.f32 %v1944, 0.5
      %v1983 = vmul.f32 %v1947, 0.5
      %v1984 = vmul.f32 %v1952, 0.5
      %v1985 = vmul.f32 %v1955, 0.5
      %v1986 = vmul.f32 %v1960, 0.5
      %v1987 = vmul.f32 %v1963, 0.5
      %v1988 = vmul.f32 %v1968, 0.5
      %v1989 = vmul.f32 %v1971, 0.5
      %v1990 = vmul.f32 %v1912, 0.70710677
      %v1991 = vmul.f32 %v1915, 0.70710677
      %v1992 = vmul.f32 %v1920, 0.70710677
      %v1993 = vmul.f32 %v1923, 0.70710677
      %v1994 = vmul.f32 %v1928, 0.70710677
      %v1995 = vmul.f32 %v1931, 0.70710677
      %v1996 = vmul.f32 %v1936, 0.70710677
      %v1997 = vmul.f32 %v1939, 0.70710677
      %v1998 = vmul.f32 %v1944, 0.70710677
      %v1999 = vmul.f32 %v1947, 0.70710677
      %v2000 = vmul.f32 %v1952, 0.70710677
      %v2001 = vmul.f32 %v1955, 0.70710677
      %v2002 = vmul.f32 %v1960, 0.70710677
      %v2003 = vmul.f32 %v1963, 0.70710677
      %v2004 = vmul.f32 %v1968, 0.70710677
      %v2005 = vmul.f32 %v1971, 0.70710677
      %v2006 = vand.u32 2147483647, %v1990
      %v2007 = vand.u32 2147483647, %v1991
      %v2008 = vand.u32 2147483647, %v1992
      %v2009 = vand.u32 2147483647, %v1993
      %v2010 = vand.u32 2147483647, %v1994
      %v2011 = vand.u32 2147483647, %v1995
      %v2012 = vand.u32 2147483647, %v1996
      %v2013 = vand.u32 2147483647, %v1997
      %v2014 = vand.u32 2147483647, %v1998
      %v2015 = vand.u32 2147483647, %v1999
      %v2016 = vand.u32 2147483647, %v2000
      %v2017 = vand.u32 2147483647, %v2001
      %v2018 = vand.u32 2147483647, %v2002
      %v2019 = vand.u32 2147483647, %v2003
      %v2020 = vand.u32 2147483647, %v2004
      %v2021 = vand.u32 2147483647, %v2005
      %v2022 = vmul.f32 %v2006, 0.3275911
      %v2023 = vmul.f32 %v2007, 0.3275911
      %v2024 = vmul.f32 %v2008, 0.3275911
      %v2025 = vmul.f32 %v2009, 0.3275911
      %v2026 = vmul.f32 %v2010, 0.3275911
      %v2027 = vmul.f32 %v2011, 0.3275911
      %v2028 = vmul.f32 %v2012, 0.3275911
      %v2029 = vmul.f32 %v2013, 0.3275911
      %v2030 = vmul.f32 %v2014, 0.3275911
      %v2031 = vmul.f32 %v2015, 0.3275911
      %v2032 = vmul.f32 %v2016, 0.3275911
      %v2033 = vmul.f32 %v2017, 0.3275911
      %v2034 = vmul.f32 %v2018, 0.3275911
      %v2035 = vmul.f32 %v2019, 0.3275911
      %v2036 = vmul.f32 %v2020, 0.3275911
      %v2037 = vmul.f32 %v2021, 0.3275911
      %v2038 = vadd.f32 %v2022, 1.0
      %v2039 = vadd.f32 %v2023, 1.0
      %v2040 = vadd.f32 %v2024, 1.0
      %v2041 = vadd.f32 %v2025, 1.0
      %v2042 = vadd.f32 %v2026, 1.0
      %v2043 = vadd.f32 %v2027, 1.0
      %v2044 = vadd.f32 %v2028, 1.0
      %v2045 = vadd.f32 %v2029, 1.0
      %v2046 = vadd.f32 %v2030, 1.0
      %v2047 = vadd.f32 %v2031, 1.0
      %v2048 = vadd.f32 %v2032, 1.0
      %v2049 = vadd.f32 %v2033, 1.0
      %v2050 = vadd.f32 %v2034, 1.0
      %v2051 = vadd.f32 %v2035, 1.0
      %v2052 = vadd.f32 %v2036, 1.0
      %v2053 = vadd.f32 %v2037, 1.0
      %v2054 = vrcp.pop %v2038
      %v2055 = vmul.f32 1.0, %v2054
      %v2056 = vrcp.pop %v2039
      %v2057 = vmul.f32 1.0, %v2056
      %v2058 = vrcp.pop %v2040
      %v2059 = vmul.f32 1.0, %v2058
      %v2060 = vrcp.pop %v2041
      %v2061 = vmul.f32 1.0, %v2060
      %v2062 = vrcp.pop %v2042
      %v2063 = vmul.f32 1.0, %v2062
      %v2064 = vrcp.pop %v2043
      %v2065 = vmul.f32 1.0, %v2064
      %v2066 = vrcp.pop %v2044
      %v2067 = vmul.f32 1.0, %v2066
      %v2068 = vrcp.pop %v2045
      %v2069 = vmul.f32 1.0, %v2068
      %v2070 = vrcp.pop %v2046
      %v2071 = vmul.f32 1.0, %v2070
      %v2072 = vrcp.pop %v2047
      %v2073 = vmul.f32 1.0, %v2072
      %v2074 = vrcp.pop %v2048
      %v2075 = vmul.f32 1.0, %v2074
      %v2076 = vrcp.pop %v2049
      %v2077 = vmul.f32 1.0, %v2076
      %v2078 = vrcp.pop %v2050
      %v2079 = vmul.f32 1.0, %v2078
      %v2080 = vrcp.pop %v2051
      %v2081 = vmul.f32 1.0, %v2080
      %v2082 = vrcp.pop %v2052
      %v2083 = vmul.f32 1.0, %v2082
      %v2084 = vrcp.pop %v2053
      %v2085 = vmul.f32 1.0, %v2084
      %v2086 = vmul.f32 %v2055, 1.0614054
      %v2087 = vmul.f32 %v2057, 1.0614054
      %v2088 = vmul.f32 %v2059, 1.0614054
      %v2089 = vmul.f32 %v2061, 1.0614054
      %v2090 = vmul.f32 %v2063, 1.0614054
      %v2091 = vmul.f32 %v2065, 1.0614054
      %v2092 = vmul.f32 %v2067, 1.0614054
      %v2093 = vmul.f32 %v2069, 1.0614054
      %v2094 = vmul.f32 %v2071, 1.0614054
      %v2095 = vmul.f32 %v2073, 1.0614054
      %v2096 = vmul.f32 %v2075, 1.0614054
      %v2097 = vmul.f32 %v2077, 1.0614054
      %v2098 = vmul.f32 %v2079, 1.0614054
      %v2099 = vmul.f32 %v2081, 1.0614054
      %v2100 = vmul.f32 %v2083, 1.0614054
      %v2101 = vmul.f32 %v2085, 1.0614054
      %v2102 = vadd.f32 %v2086, -1.4531521
      %v2103 = vadd.f32 %v2087, -1.4531521
      %v2104 = vadd.f32 %v2088, -1.4531521
      %v2105 = vadd.f32 %v2089, -1.4531521
      %v2106 = vadd.f32 %v2090, -1.4531521
      %v2107 = vadd.f32 %v2091, -1.4531521
      %v2108 = vadd.f32 %v2092, -1.4531521
      %v2109 = vadd.f32 %v2093, -1.4531521
      %v2110 = vadd.f32 %v2094, -1.4531521
      %v2111 = vadd.f32 %v2095, -1.4531521
      %v2112 = vadd.f32 %v2096, -1.4531521
      %v2113 = vadd.f32 %v2097, -1.4531521
      %v2114 = vadd.f32 %v2098, -1.4531521
      %v2115 = vadd.f32 %v2099, -1.4531521
      %v2116 = vadd.f32 %v2100, -1.4531521
      %v2117 = vadd.f32 %v2101, -1.4531521
      %v2118 = vmul.f32 %v2102, %v2055
      %v2119 = vmul.f32 %v2103, %v2057
      %v2120 = vmul.f32 %v2104, %v2059
      %v2121 = vmul.f32 %v2105, %v2061
      %v2122 = vmul.f32 %v2106, %v2063
      %v2123 = vmul.f32 %v2107, %v2065
      %v2124 = vmul.f32 %v2108, %v2067
      %v2125 = vmul.f32 %v2109, %v2069
      %v2126 = vmul.f32 %v2110, %v2071
      %v2127 = vmul.f32 %v2111, %v2073
      %v2128 = vmul.f32 %v2112, %v2075
      %v2129 = vmul.f32 %v2113, %v2077
      %v2130 = vmul.f32 %v2114, %v2079
      %v2131 = vmul.f32 %v2115, %v2081
      %v2132 = vmul.f32 %v2116, %v2083
      %v2133 = vmul.f32 %v2117, %v2085
      %v2134 = vadd.f32 %v2118, 1.4214138
      %v2135 = vadd.f32 %v2119, 1.4214138
      %v2136 = vadd.f32 %v2120, 1.4214138
      %v2137 = vadd.f32 %v2121, 1.4214138
      %v2138 = vadd.f32 %v2122, 1.4214138
      %v2139 = vadd.f32 %v2123, 1.4214138
      %v2140 = vadd.f32 %v2124, 1.4214138
      %v2141 = vadd.f32 %v2125, 1.4214138
      %v2142 = vadd.f32 %v2126, 1.4214138
      %v2143 = vadd.f32 %v2127, 1.4214138
      %v2144 = vadd.f32 %v2128, 1.4214138
      %v2145 = vadd.f32 %v2129, 1.4214138
      %v2146 = vadd.f32 %v2130, 1.4214138
      %v2147 = vadd.f32 %v2131, 1.4214138
      %v2148 = vadd.f32 %v2132, 1.4214138
      %v2149 = vadd.f32 %v2133, 1.4214138
      %v2150 = vmul.f32 %v2134, %v2055
      %v2151 = vmul.f32 %v2135, %v2057
      %v2152 = vmul.f32 %v2136, %v2059
      %v2153 = vmul.f32 %v2137, %v2061
      %v2154 = vmul.f32 %v2138, %v2063
      %v2155 = vmul.f32 %v2139, %v2065
      %v2156 = vmul.f32 %v2140, %v2067
      %v2157 = vmul.f32 %v2141, %v2069
      %v2158 = vmul.f32 %v2142, %v2071
      %v2159 = vmul.f32 %v2143, %v2073
      %v2160 = vmul.f32 %v2144, %v2075
      %v2161 = vmul.f32 %v2145, %v2077
      %v2162 = vmul.f32 %v2146, %v2079
      %v2163 = vmul.f32 %v2147, %v2081
      %v2164 = vmul.f32 %v2148, %v2083
      %v2165 = vmul.f32 %v2149, %v2085
      %v2166 = vadd.f32 %v2150, -0.28449672
      %v2167 = vadd.f32 %v2151, -0.28449672
      %v2168 = vadd.f32 %v2152, -0.28449672
      %v2169 = vadd.f32 %v2153, -0.28449672
      %v2170 = vadd.f32 %v2154, -0.28449672
      %v2171 = vadd.f32 %v2155, -0.28449672
      %v2172 = vadd.f32 %v2156, -0.28449672
      %v2173 = vadd.f32 %v2157, -0.28449672
      %v2174 = vadd.f32 %v2158, -0.28449672
      %v2175 = vadd.f32 %v2159, -0.28449672
      %v2176 = vadd.f32 %v2160, -0.28449672
      %v2177 = vadd.f32 %v2161, -0.28449672
      %v2178 = vadd.f32 %v2162, -0.28449672
      %v2179 = vadd.f32 %v2163, -0.28449672
      %v2180 = vadd.f32 %v2164, -0.28449672
      %v2181 = vadd.f32 %v2165, -0.28449672
      %v2182 = vmul.f32 %v2166, %v2055
      %v2183 = vmul.f32 %v2167, %v2057
      %v2184 = vmul.f32 %v2168, %v2059
      %v2185 = vmul.f32 %v2169, %v2061
      %v2186 = vmul.f32 %v2170, %v2063
      %v2187 = vmul.f32 %v2171, %v2065
      %v2188 = vmul.f32 %v2172, %v2067
      %v2189 = vmul.f32 %v2173, %v2069
      %v2190 = vmul.f32 %v2174, %v2071
      %v2191 = vmul.f32 %v2175, %v2073
      %v2192 = vmul.f32 %v2176, %v2075
      %v2193 = vmul.f32 %v2177, %v2077
      %v2194 = vmul.f32 %v2178, %v2079
      %v2195 = vmul.f32 %v2179, %v2081
      %v2196 = vmul.f32 %v2180, %v2083
      %v2197 = vmul.f32 %v2181, %v2085
      %v2198 = vadd.f32 %v2182, 0.2548296
      %v2199 = vadd.f32 %v2183, 0.2548296
      %v2200 = vadd.f32 %v2184, 0.2548296
      %v2201 = vadd.f32 %v2185, 0.2548296
      %v2202 = vadd.f32 %v2186, 0.2548296
      %v2203 = vadd.f32 %v2187, 0.2548296
      %v2204 = vadd.f32 %v2188, 0.2548296
      %v2205 = vadd.f32 %v2189, 0.2548296
      %v2206 = vadd.f32 %v2190, 0.2548296
      %v2207 = vadd.f32 %v2191, 0.2548296
      %v2208 = vadd.f32 %v2192, 0.2548296
      %v2209 = vadd.f32 %v2193, 0.2548296
      %v2210 = vadd.f32 %v2194, 0.2548296
      %v2211 = vadd.f32 %v2195, 0.2548296
      %v2212 = vadd.f32 %v2196, 0.2548296
      %v2213 = vadd.f32 %v2197, 0.2548296
      %v2214 = vmul.f32 %v2198, %v2055
      %v2215 = vmul.f32 %v2199, %v2057
      %v2216 = vmul.f32 %v2200, %v2059
      %v2217 = vmul.f32 %v2201, %v2061
      %v2218 = vmul.f32 %v2202, %v2063
      %v2219 = vmul.f32 %v2203, %v2065
      %v2220 = vmul.f32 %v2204, %v2067
      %v2221 = vmul.f32 %v2205, %v2069
      %v2222 = vmul.f32 %v2206, %v2071
      %v2223 = vmul.f32 %v2207, %v2073
      %v2224 = vmul.f32 %v2208, %v2075
      %v2225 = vmul.f32 %v2209, %v2077
      %v2226 = vmul.f32 %v2210, %v2079
      %v2227 = vmul.f32 %v2211, %v2081
      %v2228 = vmul.f32 %v2212, %v2083
      %v2229 = vmul.f32 %v2213, %v2085
      %v2230 = vsub.f32 0.0, %v2006
      %v2231 = vsub.f32 0.0, %v2007
      %v2232 = vsub.f32 0.0, %v2008
      %v2233 = vsub.f32 0.0, %v2009
      %v2234 = vsub.f32 0.0, %v2010
      %v2235 = vsub.f32 0.0, %v2011
      %v2236 = vsub.f32 0.0, %v2012
      %v2237 = vsub.f32 0.0, %v2013
      %v2238 = vsub.f32 0.0, %v2014
      %v2239 = vsub.f32 0.0, %v2015
      %v2240 = vsub.f32 0.0, %v2016
      %v2241 = vsub.f32 0.0, %v2017
      %v2242 = vsub.f32 0.0, %v2018
      %v2243 = vsub.f32 0.0, %v2019
      %v2244 = vsub.f32 0.0, %v2020
      %v2245 = vsub.f32 0.0, %v2021
      %v2246 = vmul.f32 %v2230, %v2006
      %v2247 = vmul.f32 %v2231, %v2007
      %v2248 = vmul.f32 %v2232, %v2008
      %v2249 = vmul.f32 %v2233, %v2009
      %v2250 = vmul.f32 %v2234, %v2010
      %v2251 = vmul.f32 %v2235, %v2011
      %v2252 = vmul.f32 %v2236, %v2012
      %v2253 = vmul.f32 %v2237, %v2013
      %v2254 = vmul.f32 %v2238, %v2014
      %v2255 = vmul.f32 %v2239, %v2015
      %v2256 = vmul.f32 %v2240, %v2016
      %v2257 = vmul.f32 %v2241, %v2017
      %v2258 = vmul.f32 %v2242, %v2018
      %v2259 = vmul.f32 %v2243, %v2019
      %v2260 = vmul.f32 %v2244, %v2020
      %v2261 = vmul.f32 %v2245, %v2021
      %v2262 = vmul.f32 %v2246, 1.442695
      %v2263 = vpow.pop %v2262
      %v2264 = vmul.f32 %v2247, 1.442695
      %v2265 = vpow.pop %v2264
      %v2266 = vmul.f32 %v2248, 1.442695
      %v2267 = vpow.pop %v2266
      %v2268 = vmul.f32 %v2249, 1.442695
      %v2269 = vpow.pop %v2268
      %v2270 = vmul.f32 %v2250, 1.442695
      %v2271 = vpow.pop %v2270
      %v2272 = vmul.f32 %v2251, 1.442695
      %v2273 = vpow.pop %v2272
      %v2274 = vmul.f32 %v2252, 1.442695
      %v2275 = vpow.pop %v2274
      %v2276 = vmul.f32 %v2253, 1.442695
      %v2277 = vpow.pop %v2276
      %v2278 = vmul.f32 %v2254, 1.442695
      %v2279 = vpow.pop %v2278
      %v2280 = vmul.f32 %v2255, 1.442695
      %v2281 = vpow.pop %v2280
      %v2282 = vmul.f32 %v2256, 1.442695
      %v2283 = vpow.pop %v2282
      %v2284 = vmul.f32 %v2257, 1.442695
      %v2285 = vpow.pop %v2284
      %v2286 = vmul.f32 %v2258, 1.442695
      %v2287 = vpow.pop %v2286
      %v2288 = vmul.f32 %v2259, 1.442695
      %v2289 = vpow.pop %v2288
      %v2290 = vmul.f32 %v2260, 1.442695
      %v2291 = vpow.pop %v2290
      %v2292 = vmul.f32 %v2261, 1.442695
      %v2293 = vpow.pop %v2292
      %v2294 = vmul.f32 %v2214, %v2263
      %v2295 = vmul.f32 %v2215, %v2265
      %v2296 = vmul.f32 %v2216, %v2267
      %v2297 = vmul.f32 %v2217, %v2269
      %v2298 = vmul.f32 %v2218, %v2271
      %v2299 = vmul.f32 %v2219, %v2273
      %v2300 = vmul.f32 %v2220, %v2275
      %v2301 = vmul.f32 %v2221, %v2277
      %v2302 = vmul.f32 %v2222, %v2279
      %v2303 = vmul.f32 %v2223, %v2281
      %v2304 = vmul.f32 %v2224, %v2283
      %v2305 = vmul.f32 %v2225, %v2285
      %v2306 = vmul.f32 %v2226, %v2287
      %v2307 = vmul.f32 %v2227, %v2289
      %v2308 = vmul.f32 %v2228, %v2291
      %v2309 = vmul.f32 %v2229, %v2293
      %v2310 = vsub.f32 1.0, %v2294
      %v2311 = vsub.f32 1.0, %v2295
      %v2312 = vsub.f32 1.0, %v2296
      %v2313 = vsub.f32 1.0, %v2297
      %v2314 = vsub.f32 1.0, %v2298
      %v2315 = vsub.f32 1.0, %v2299
      %v2316 = vsub.f32 1.0, %v2300
      %v2317 = vsub.f32 1.0, %v2301
      %v2318 = vsub.f32 1.0, %v2302
      %v2319 = vsub.f32 1.0, %v2303
      %v2320 = vsub.f32 1.0, %v2304
      %v2321 = vsub.f32 1.0, %v2305
      %v2322 = vsub.f32 1.0, %v2306
      %v2323 = vsub.f32 1.0, %v2307
      %v2324 = vsub.f32 1.0, %v2308
      %v2325 = vsub.f32 1.0, %v2309
      %vm2326 = vcmp.ge.f32.partialorder %v1990, 0.0
      %vm2327 = vcmp.ge.f32.partialorder %v1991, 0.0
      %vm2328 = vcmp.ge.f32.partialorder %v1992, 0.0
      %vm2329 = vcmp.ge.f32.partialorder %v1993, 0.0
      %vm2330 = vcmp.ge.f32.partialorder %v1994, 0.0
      %vm2331 = vcmp.ge.f32.partialorder %v1995, 0.0
      %vm2332 = vcmp.ge.f32.partialorder %v1996, 0.0
      %vm2333 = vcmp.ge.f32.partialorder %v1997, 0.0
      %vm2334 = vcmp.ge.f32.partialorder %v1998, 0.0
      %vm2335 = vcmp.ge.f32.partialorder %v1999, 0.0
      %vm2336 = vcmp.ge.f32.partialorder %v2000, 0.0
      %vm2337 = vcmp.ge.f32.partialorder %v2001, 0.0
      %vm2338 = vcmp.ge.f32.partialorder %v2002, 0.0
      %vm2339 = vcmp.ge.f32.partialorder %v2003, 0.0
      %vm2340 = vcmp.ge.f32.partialorder %v2004, 0.0
      %vm2341 = vcmp.ge.f32.partialorder %v2005, 0.0
      %v2342 = vsub.f32 0.0, %v2310
      %v2343 = vsub.f32 0.0, %v2311
      %v2344 = vsub.f32 0.0, %v2312
      %v2345 = vsub.f32 0.0, %v2313
      %v2346 = vsub.f32 0.0, %v2314
      %v2347 = vsub.f32 0.0, %v2315
      %v2348 = vsub.f32 0.0, %v2316
      %v2349 = vsub.f32 0.0, %v2317
      %v2350 = vsub.f32 0.0, %v2318
      %v2351 = vsub.f32 0.0, %v2319
      %v2352 = vsub.f32 0.0, %v2320
      %v2353 = vsub.f32 0.0, %v2321
      %v2354 = vsub.f32 0.0, %v2322
      %v2355 = vsub.f32 0.0, %v2323
      %v2356 = vsub.f32 0.0, %v2324
      %v2357 = vsub.f32 0.0, %v2325
      %v2358 = vsel %vm2326, %v2310, %v2342
      %v2359 = vsel %vm2327, %v2311, %v2343
      %v2360 = vsel %vm2328, %v2312, %v2344
      %v2361 = vsel %vm2329, %v2313, %v2345
      %v2362 = vsel %vm2330, %v2314, %v2346
      %v2363 = vsel %vm2331, %v2315, %v2347
      %v2364 = vsel %vm2332, %v2316, %v2348
      %v2365 = vsel %vm2333, %v2317, %v2349
      %v2366 = vsel %vm2334, %v2318, %v2350
      %v2367 = vsel %vm2335, %v2319, %v2351
      %v2368 = vsel %vm2336, %v2320, %v2352
      %v2369 = vsel %vm2337, %v2321, %v2353
      %v2370 = vsel %vm2338, %v2322, %v2354
      %v2371 = vsel %vm2339, %v2323, %v2355
      %v2372 = vsel %vm2340, %v2324, %v2356
      %v2373 = vsel %vm2341, %v2325, %v2357
      %v2374 = vadd.f32 %v2358, 1.0
      %v2375 = vadd.f32 %v2359, 1.0
      %v2376 = vadd.f32 %v2360, 1.0
      %v2377 = vadd.f32 %v2361, 1.0
      %v2378 = vadd.f32 %v2362, 1.0
      %v2379 = vadd.f32 %v2363, 1.0
      %v2380 = vadd.f32 %v2364, 1.0
      %v2381 = vadd.f32 %v2365, 1.0
      %v2382 = vadd.f32 %v2366, 1.0
      %v2383 = vadd.f32 %v2367, 1.0
      %v2384 = vadd.f32 %v2368, 1.0
      %v2385 = vadd.f32 %v2369, 1.0
      %v2386 = vadd.f32 %v2370, 1.0
      %v2387 = vadd.f32 %v2371, 1.0
      %v2388 = vadd.f32 %v2372, 1.0
      %v2389 = vadd.f32 %v2373, 1.0
      %v2390 = vmul.f32 %v1974, %v2374
      %v2391 = vmul.f32 %v1975, %v2375
      %v2392 = vmul.f32 %v1976, %v2376
      %v2393 = vmul.f32 %v1977, %v2377
      %v2394 = vmul.f32 %v1978, %v2378
      %v2395 = vmul.f32 %v1979, %v2379
      %v2396 = vmul.f32 %v1980, %v2380
      %v2397 = vmul.f32 %v1981, %v2381
      %v2398 = vmul.f32 %v1982, %v2382
      %v2399 = vmul.f32 %v1983, %v2383
      %v2400 = vmul.f32 %v1984, %v2384
      %v2401 = vmul.f32 %v1985, %v2385
      %v2402 = vmul.f32 %v1986, %v2386
      %v2403 = vmul.f32 %v1987, %v2387
      %v2404 = vmul.f32 %v1988, %v2388
      %v2405 = vmul.f32 %v1989, %v2389
      %v2406 = vpack.c.bf16 %v2391, %v2390
      %v2407 = vpack.c.bf16 %v2393, %v2392
      %v2408 = vpack.c.bf16 %v2395, %v2394
      %v2409 = vpack.c.bf16 %v2397, %v2396
      %v2410 = vpack.c.bf16 %v2399, %v2398
      %v2411 = vpack.c.bf16 %v2401, %v2400
      %v2412 = vpack.c.bf16 %v2403, %v2402
      %v2413 = vpack.c.bf16 %v2405, %v2404
      %v2414 = vld [vmem:[%s6] sm:$0xf]
      %v2415 = vld [vmem:[%s6 + $0x4] sm:$0xf]
      %v2416 = vld [vmem:[%s6 + $0x8] sm:$0xf]
      %v2417 = vld [vmem:[%s6 + $0xc] sm:$0xf]
      %v2418 = vld [vmem:[%s6 + $0x10] sm:$0xf]
      %v2419 = vld [vmem:[%s6 + $0x14] sm:$0xf]
      %v2420 = vld [vmem:[%s6 + $0x18] sm:$0xf]
      %v2421 = vld [vmem:[%s6 + $0x1c] sm:$0xf]
      %v2422 = vlaneseq
      %v2423 = vshrl.u32 %v2422, 7
      %v2424 = vsub.s32 4, %v2423
      %v2425 = vrot.slane %v1332, %v2424
      %v2434 = vunpack.c.l.b16 %v2414
      %v2435 = vunpack.c.l.b16 %v2415
      %v2436 = vunpack.c.l.b16 %v2416
      %v2437 = vunpack.c.l.b16 %v2417
      %v2438 = vunpack.c.l.b16 %v2418
      %v2439 = vunpack.c.l.b16 %v2419
      %v2440 = vunpack.c.l.b16 %v2420
      %v2441 = vunpack.c.l.b16 %v2421
      %v2442 = vpack.c.b16 %v2435, %v2434
      %v2443 = vpack.c.b16 %v2437, %v2436
      %v2444 = vpack.c.b16 %v2439, %v2438
      %v2445 = vpack.c.b16 %v2441, %v2440
      %vm2450 = vcmask 523264
      %v2452 = vsel %vm2450, %v2406, 0
      %v2455 = vsel %vm2450, %v2407, 0
      %v2458 = vsel %vm2450, %v2408, 0
      %v2461 = vsel %vm2450, %v2409, 0
      %v2464 = vsel %vm2450, %v2410, 0
      %v2467 = vsel %vm2450, %v2411, 0
      %v2470 = vsel %vm2450, %v2412, 0
      %v2473 = vsel %vm2450, %v2413, 0
      %2475 = vmatprep.subr.bf16.mxu0 0
      %2476 = vmatpush1.bf16.msra.mxu0 %v2442
      %2477 = vmatprep.subr.bf16.mxu0 0
      %2478 = vmatpush1.bf16.msra.mxu0 %v2443
      %2479 = vmatprep.subr.bf16.mxu0 0
      %2480 = vmatpush1.bf16.msra.mxu0 %v2444
      %2481 = vmatprep.subr.bf16.mxu0 0
      %2482 = vmatpush1.bf16.msra.mxu0 %v2445
      %2483 = vmatprep.subr.bf16.mxu0 0
      %2484 = vmatpush1.bf16.msra.mxu0 0
      %2485 = vmatprep.subr.bf16.mxu0 0
      %2486 = vmatpush1.bf16.msra.mxu0 0
      %2487 = vmatprep.subr.bf16.mxu0 0
      %2488 = vmatpush1.bf16.msra.mxu0 0
      %2489 = vmatprep.subr.bf16.mxu0 0
      %2490 = vmatpush1.bf16.msra.mxu0 0
      %2491 = vmatprep.subr.bf16.mxu0 0
      %2492 = vmatpush1.bf16.msra.mxu0 0
      %2493 = vmatprep.subr.bf16.mxu0 0
      %2494 = vmatpush1.bf16.msra.mxu0 0
      %2495 = vmatprep.subr.bf16.mxu0 0
      %2496 = vmatpush1.bf16.msra.mxu0 0
      %2497 = vmatprep.subr.bf16.mxu0 0
      %2498 = vmatpush1.bf16.msra.mxu0 0
      %2499 = vmatprep.subr.bf16.mxu0 0
      %2500 = vmatpush1.bf16.msra.mxu0 0
      %2501 = vmatprep.subr.bf16.mxu0 0
      %2502 = vmatpush1.bf16.msra.mxu0 0
      %2503 = vmatprep.subr.bf16.mxu0 0
      %2504 = vmatpush1.bf16.msra.mxu0 0
      %2505 = vmatprep.subr.bf16.mxu0 0
      %2506 = vmatpush1.bf16.msra.mxu0 0
      %2507 = vmatprep.mubr.bf16.mxu0 0
      %2508 = vmatmul.mubr.bf16.gmra.mrb[0].mxu0 %v2452
      %v2509 = vpop.f32.mrb[0].mxu0
      %v2510 = vadd.f32 %v2425, %v2509
      %v2511 = vpop.f32.mrb[0].mxu0
      %v2512 = vpop.f32.mrb[0].mxu0
      %v2513 = vadd.f32 %v2425, %v2512
      %v2514 = vpop.f32.mrb[0].mxu0
      %2515 = vmatprep.mubr.bf16.mxu0 0
      %2516 = vmatmul.mubr.bf16.gmra.mrb[0].mxu0 %v2455
      %v2517 = vpop.f32.mrb[0].mxu0
      %v2518 = vadd.f32 %v2425, %v2517
      %v2519 = vpop.f32.mrb[0].mxu0
      %v2520 = vpop.f32.mrb[0].mxu0
      %v2521 = vadd.f32 %v2425, %v2520
      %v2522 = vpop.f32.mrb[0].mxu0
      %2523 = vmatprep.mubr.bf16.mxu0 0
      %2524 = vmatmul.mubr.bf16.gmra.mrb[0].mxu0 %v2458
      %v2525 = vpop.f32.mrb[0].mxu0
      %v2526 = vadd.f32 %v2425, %v2525
      %v2527 = vpop.f32.mrb[0].mxu0
      %v2528 = vpop.f32.mrb[0].mxu0
      %v2529 = vadd.f32 %v2425, %v2528
      %v2530 = vpop.f32.mrb[0].mxu0
      %2531 = vmatprep.mubr.bf16.mxu0 0
      %2532 = vmatmul.mubr.bf16.gmra.mrb[0].mxu0 %v2461
      %v2533 = vpop.f32.mrb[0].mxu0
      %v2534 = vadd.f32 %v2425, %v2533
      %v2535 = vpop.f32.mrb[0].mxu0
      %v2536 = vpop.f32.mrb[0].mxu0
      %v2537 = vadd.f32 %v2425, %v2536
      %v2538 = vpop.f32.mrb[0].mxu0
      %2539 = vmatprep.mubr.bf16.mxu0 0
      %2540 = vmatmul.mubr.bf16.gmra.mrb[0].mxu0 %v2464
      %v2541 = vpop.f32.mrb[0].mxu0
      %v2542 = vadd.f32 %v2425, %v2541
      %v2543 = vpop.f32.mrb[0].mxu0
      %v2544 = vpop.f32.mrb[0].mxu0
      %v2545 = vadd.f32 %v2425, %v2544
      %v2546 = vpop.f32.mrb[0].mxu0
      %2547 = vmatprep.mubr.bf16.mxu0 0
      %2548 = vmatmul.mubr.bf16.gmra.mrb[0].mxu0 %v2467
      %v2549 = vpop.f32.mrb[0].mxu0
      %v2550 = vadd.f32 %v2425, %v2549
      %v2551 = vpop.f32.mrb[0].mxu0
      %v2552 = vpop.f32.mrb[0].mxu0
      %v2553 = vadd.f32 %v2425, %v2552
      %v2554 = vpop.f32.mrb[0].mxu0
      %2555 = vmatprep.mubr.bf16.mxu0 0
      %2556 = vmatmul.mubr.bf16.gmra.mrb[0].mxu0 %v2470
      %v2557 = vpop.f32.mrb[0].mxu0
      %v2558 = vadd.f32 %v2425, %v2557
      %v2559 = vpop.f32.mrb[0].mxu0
      %v2560 = vpop.f32.mrb[0].mxu0
      %v2561 = vadd.f32 %v2425, %v2560
      %v2562 = vpop.f32.mrb[0].mxu0
      %2563 = vmatprep.mubr.bf16.mxu0 0
      %2564 = vmatmul.mubr.bf16.gmra.mrb[0].mxu0 %v2473
      %v2565 = vpop.f32.mrb[0].mxu0
      %v2566 = vadd.f32 %v2425, %v2565
      %v2567 = vpop.f32.mrb[0].mxu0
      %v2568 = vpop.f32.mrb[0].mxu0
      %v2569 = vadd.f32 %v2425, %v2568
      %v2570 = vpop.f32.mrb[0].mxu0
      %2571 = vdwg.mxu0
      %2572 = vst.msk [vmem:[%s337] sm:$0xff] %vm367, %v2510
      %2573 = vst.msk [vmem:[%s337 + $0x8] sm:$0xff] %vm367, %v2513
      %2574 = vst.msk [vmem:[%s337 + $0x10] sm:$0xff] %vm367, %v2518
      %2575 = vst.msk [vmem:[%s337 + $0x18] sm:$0xff] %vm367, %v2521
      %2576 = vst.msk [vmem:[%s337 + $0x20] sm:$0xff] %vm367, %v2526
      %2577 = vst.msk [vmem:[%s337 + $0x28] sm:$0xff] %vm367, %v2529
      %2578 = vst.msk [vmem:[%s337 + $0x30] sm:$0xff] %vm367, %v2534
      %2579 = vst.msk [vmem:[%s337 + $0x38] sm:$0xff] %vm367, %v2537
      %2580 = vst.msk [vmem:[%s343] sm:$0xff] %vm367, %v2542
      %2581 = vst.msk [vmem:[%s343 + $0x8] sm:$0xff] %vm367, %v2545
      %2582 = vst.msk [vmem:[%s343 + $0x10] sm:$0xff] %vm367, %v2550
      %2583 = vst.msk [vmem:[%s343 + $0x18] sm:$0xff] %vm367, %v2553
      %2584 = vst.msk [vmem:[%s343 + $0x20] sm:$0xff] %vm367, %v2558
      %2585 = vst.msk [vmem:[%s343 + $0x28] sm:$0xff] %vm367, %v2561
      %2586 = vst.msk [vmem:[%s343 + $0x30] sm:$0xff] %vm367, %v2566
      %2587 = vst.msk [vmem:[%s343 + $0x38] sm:$0xff] %vm367, %v2569
      %s2588 = smul.u32 8, %s20
      %p2589 = scmp.lt.s32.totalorder %s2588, 15
      %s2590 = scalar_select %p2589, %s2588, 15
      %s2591 = smul.addr %s2590, 8
      %s2592 = scalar_lea.vmem %s7, %s2591
      %s2593 = smul.u32 8, %s20
      %p2594 = scmp.lt.s32.totalorder %s2593, 15
      %s2595 = scalar_select %p2594, %s2593, 15
      %s2596 = smul.addr %s2595, 8
      %s2597 = scalar_lea.vmem %s8, %s2596
      // Predicated region
      $region49: #{tpu_custom_call.1} parent=47 // pred_check
        %p2598 = pneg %p195
      $region50: #{tpu_custom_call.1} parent=47 // pred_check_branch
        %2600 = sbr.rel (%p2598) target = $region52
      $region51: #{tpu_custom_call.1} parent=47 // pred_region
        %s2601 = smul.u32 8, %s20
      $region52: #{tpu_custom_call.1} parent=47 // pred_fallthru
        _
      // Predicated region
      $region53: #{tpu_custom_call.1} parent=47 // pred_check
        %p2602 = pneg %p221
      $region54: #{tpu_custom_call.1} parent=47 // pred_check_branch
        %2604 = sbr.rel (%p2602) target = $region56
      $region55: #{tpu_custom_call.1} parent=47 // pred_region
        %s2605 = smul.u32 8, %s20
      $region56: #{tpu_custom_call.1} parent=47 // pred_fallthru
        _
    $region48: #{tpu_custom_call.1} parent=5 // pred_fallthru
      _
    %p2606 = scmp.le.s32.totalorder 2, %s15
    // Predicated region
    $region57: #{tpu_custom_call.1} parent=5 // pred_check
      %p2607 = pneg %p2606
    $region58: #{tpu_custom_call.1} parent=5 // pred_check_branch
      %2609 = sbr.rel (%p2607) target = $region60
    $region59: #{tpu_custom_call.1} parent=5 // pred_region
      %s2610 = ssub.s32 %s15, 2
      // Predicated region
      $region61: #{tpu_custom_call.1} parent=59 // pred_check
        %p2611 = pneg %p201
      $region62: #{tpu_custom_call.1} parent=59 // pred_check_branch
        %2613 = sbr.rel (%p2611) target = $region64
      $region63: #{tpu_custom_call.1} parent=59 // pred_region
        %s2614 = smul.u32 8, %s21
        %p2615 = scmp.lt.s32.totalorder %s2614, 15
        %s2616 = scalar_select %p2615, %s2614, 15
        %s2617 = smul.addr %s2616, 8
        %s2618 = scalar_lea.vmem %s7, %s2617
      $region64: #{tpu_custom_call.1} parent=59 // pred_fallthru
        _
      // Predicated region
      $region65: #{tpu_custom_call.1} parent=59 // pred_check
        %p2619 = pneg %p227
      $region66: #{tpu_custom_call.1} parent=59 // pred_check_branch
        %2621 = sbr.rel (%p2619) target = $region68
      $region67: #{tpu_custom_call.1} parent=59 // pred_region
        %s2622 = smul.u32 8, %s21
        %p2623 = scmp.lt.s32.totalorder %s2622, 15
        %s2624 = scalar_select %p2623, %s2622, 15
        %s2625 = smul.addr %s2624, 8
        %s2626 = scalar_lea.vmem %s8, %s2625
      $region68: #{tpu_custom_call.1} parent=59 // pred_fallthru
        _
    $region60: #{tpu_custom_call.1} parent=5 // pred_fallthru
      _
  $region6: #{tpu_custom_call.1} parent=0 // loop_footer
    %s19 = sadd.s32 1, %s15
  $region7: #{tpu_custom_call.1} parent=0 // loop_footer_branch
    %14 = sbr.rel target = $region3
  $region8: #{tpu_custom_call.1} parent=0 // loop_exit
    _

</llo_original>
